<compile_context>
chip_gen: v7x
topology: tpu7x:2x2x1
jax: 0.10.0
libtpu: 0.0.40
codegen_flags: <defaults>
</compile_context>

<pallas_src>
import functools

import jax
import jax.numpy as jnp
from jax.experimental import pallas as pl
from jax.experimental.pallas import tpu as pltpu


# ----------------------------- in-kernel helpers -----------------------------
def _layer_norm(z, g, b, eps=1e-5):
    mu = jnp.mean(z, axis=-1, keepdims=True)
    var = jnp.mean(jnp.square(z - mu), axis=-1, keepdims=True)
    return (z - mu) * jax.lax.rsqrt(var + eps) * g + b


def _gelu_erf(x):
    """Exact (erf-based) GELU; erf via A&S 7.1.26 (|err| <= 1.5e-7)."""
    z = x * 0.7071067811865476
    az = jnp.abs(z)
    t = 1.0 / (1.0 + 0.3275911 * az)
    poly = t * (0.254829592 + t * (-0.284496736 + t * (1.421413741
             + t * (-1.453152027 + t * 1.061405429))))
    erf_abs = 1.0 - poly * jnp.exp(-az * az)
    erf = jnp.where(z < 0.0, -erf_abs, erf_abs)
    return 0.5 * x * (1.0 + erf)


# ------------------------- kernel 1: conv + attention ------------------------
def _attn_kernel(x_ref, conv_w_ref, conv_b_ref, g1_ref, b1_ref,
                 qbd_ref, wkv_ref, hmask_ref, att_ref, xpad_ref, *, eps=1e-5):
    f32 = jnp.float32
    cd = wkv_ref.dtype                       # matmul operand dtype (bf16 / f32)
    _, H, W, C = x_ref.shape
    N = H * W
    n_q = att_ref.shape[1]
    num_heads = hmask_ref.shape[0]

    x = x_ref[0].astype(f32)                 # (H, W, C), channels-last

    # ---- pos_embed: depthwise 3x3 conv, zero-pad folded into the kernel -----
    # Fill a VMEM halo slab once, then load the 3 W-shifted windows once and
    # reuse them across the 3 H offsets (free leading-dim slices).
    xpad_ref[...] = jnp.zeros((H + 2, W + 2, C), f32)
    xpad_ref[1:H + 1, 1:W + 1, :] = x
    xw = [xpad_ref[:, dw:dw + W, :] for dw in range(3)]     # (H+2, W, C) each

    cw = conv_w_ref[...]                      # (9, C); tap t = dh*3 + dw
    acc = jnp.zeros((H, W, C), f32)
    for dh in range(3):
        for dw in range(3):
            acc = acc + xw[dw][dh:dh + H] * cw[dh * 3 + dw]
    y = (x + acc).reshape(N, C) + conv_b_ref[...]            # residual + bias

    # ---- norm1 + fused K||V projection (one (N,C)x(C,2C) MXU matmul) --------
    yn = _layer_norm(y, g1_ref[...], b1_ref[...], eps)
    kv = jnp.dot(yn.astype(cd), wkv_ref[...], preferred_element_type=f32)
    k = kv[:, :C].astype(cd)                  # lane-aligned (free) splits
    v = kv[:, C:].astype(cd)

    # ---- query_Attention with block-diagonal pre-scaled q -------------------
    # qbd row (h*n_q + i) holds head h's query i in columns [h*d, (h+1)*d) and
    # zeros elsewhere -> one full-K matmul gives every per-head logit row.
    logits = jax.lax.dot_general(qbd_ref[...], k, (((1,), (1,)), ((), ())),
                                 preferred_element_type=f32)  # (nh*n_q, N)
    m = jnp.max(logits, axis=-1, keepdims=True)
    e = jnp.exp(logits - m)
    p = e / jnp.sum(e, axis=-1, keepdims=True)                # softmax (f32)
    of = jnp.dot(p.astype(cd), v, preferred_element_type=f32)  # (nh*n_q, C)

    # merge heads: head-h rows contribute only their own channel block
    att = of[0:n_q, :] * hmask_ref[0]
    for h in range(1, num_heads):
        att = att + of[h * n_q:(h + 1) * n_q, :] * hmask_ref[h]

    att_ref[0] = att.astype(att_ref.dtype)


# --------------------- kernel 2: batched (B*10, C) tail ----------------------
def _tail_kernel(att_ref, wp_ref, bp_ref, g2_ref, b2_ref,
                 w1_ref, bm1_ref, w2_ref, bm2_ref, o_ref, *, eps=1e-5):
    f32 = jnp.float32
    cd = wp_ref.dtype
    att = att_ref[...].astype(f32)                                  # (B*nq, C)
    a = jnp.dot(att.astype(cd), wp_ref[...],
                preferred_element_type=f32) + bp_ref[...]           # out proj
    m2 = _layer_norm(a, g2_ref[...], b2_ref[...], eps)
    h1 = jnp.dot(m2.astype(cd), w1_ref[...],
                 preferred_element_type=f32) + bm1_ref[...]
    h1 = _gelu_erf(h1)                                              # exact GELU
    h2 = jnp.dot(h1.astype(cd), w2_ref[...],
                 preferred_element_type=f32) + bm2_ref[...]
    o_ref[...] = (a + h2).astype(o_ref.dtype)                       # residual


# --------------------------------- wrapper -----------------------------------
@functools.partial(jax.jit, static_argnames=("num_heads", "matmul_dtype"))
def query_sa_block_pallas(x, params, *, num_heads, matmul_dtype=jnp.bfloat16):
    """x: (B, C, H, W) -> (B, 10, C)."""
    f32 = jnp.float32
    B, C, H, W = x.shape
    N = H * W
    n_q = params["q"].shape[0]               # 10 learned query tokens
    hidden = params["w1"].shape[1]
    d = C // num_heads
    scale = float(d) ** -0.5
    cd = matmul_dtype

    # Only a channels-last transpose in the wrapper; the conv zero-pad is done
    # inside the kernel (one fewer full HBM pass over the input).
    x_cl = jnp.transpose(x, (0, 2, 3, 1))                     # (B, H, W, C)

    conv_w = params["conv_w"].reshape(C, 9).T.astype(f32)     # (9, C)
    conv_b = params["conv_b"].reshape(1, C).astype(f32)
    g1 = params["g1"].reshape(1, C).astype(f32)
    b1 = params["b1"].reshape(1, C).astype(f32)

    # Block-diagonal, pre-scaled query (constant parameter -> built once here).
    q_scaled = params["q"].astype(f32) * scale                # scale folded in
    q_heads = q_scaled.reshape(n_q, num_heads, d)
    eye = jnp.eye(num_heads, dtype=f32)
    qbd = (eye[:, None, :, None] * q_heads[None, :, :, :]
           ).reshape(num_heads * n_q, C).astype(cd)           # (nh*n_q, C)
    head_mask = (jnp.arange(C) // d ==
                 jnp.arange(num_heads)[:, None]).astype(f32)  # (nh, C)

    wkv = jnp.concatenate([params["wk"], params["wv"]], axis=1).astype(cd)

    wp = params["wp"].astype(cd)
    bp = params["bp"].reshape(1, C).astype(f32)
    g2 = params["g2"].reshape(1, C).astype(f32)
    b2 = params["b2"].reshape(1, C).astype(f32)
    w1 = params["w1"].astype(cd)
    bm1 = params["bm1"].reshape(1, hidden).astype(f32)
    w2 = params["w2"].astype(cd)
    bm2 = params["bm2"].reshape(1, C).astype(f32)

    # ---------------- kernel 1: per-image conv + norm1 + attention ----------
    attn_args = (x_cl, conv_w, conv_b, g1, b1, qbd, wkv, head_mask)

    def full(arr):  # whole-array block, constant index map -> VMEM resident
        return pl.BlockSpec(arr.shape, lambda b, _n=arr.ndim: (0,) * _n)

    flops1 = B * (2 * 9 * N * C                      # depthwise conv
                  + 2 * N * C * 2 * C                # fused K||V projection
                  + 2 * 2 * num_heads * n_q * N * C)  # q@k^T and p@v
    trans1 = B * (num_heads * n_q * N + 2 * N)
    bytes1 = (sum(int(a.size) * a.dtype.itemsize for a in attn_args)
              + B * n_q * C * 4)

    att = pl.pallas_call(
        _attn_kernel,
        out_shape=jax.ShapeDtypeStruct((B, n_q, C), jnp.float32),
        grid_spec=pltpu.PrefetchScalarGridSpec(
            num_scalar_prefetch=0,
            grid=(B,),
            in_specs=[
                pl.BlockSpec((1, H, W, C), lambda b: (b, 0, 0, 0)),
                full(conv_w), full(conv_b), full(g1), full(b1),
                full(qbd), full(wkv), full(head_mask),
            ],
            out_specs=pl.BlockSpec((1, n_q, C), lambda b: (b, 0, 0)),
            scratch_shapes=[pltpu.VMEM((H + 2, W + 2, C), jnp.float32)],
        ),
        compiler_params=pltpu.CompilerParams(
            dimension_semantics=("parallel",),       # batch across TensorCores
            vmem_limit_bytes=48 * 1024 * 1024),
        cost_estimate=pl.CostEstimate(flops=flops1, transcendentals=trans1,
                                      bytes_accessed=bytes1),
    )(*attn_args)

    # ----------- kernel 2: batched tail over the whole (B*n_q, C) slab ------
    att2d = att.reshape(B * n_q, C)
    tail_args = (att2d, wp, bp, g2, b2, w1, bm1, w2, bm2)
    flops2 = 2 * (B * n_q) * (C * C + 2 * C * hidden)
    bytes2 = (sum(int(a.size) * a.dtype.itemsize for a in tail_args)
              + B * n_q * C * x.dtype.itemsize)

    out2d = pl.pallas_call(
        _tail_kernel,
        out_shape=jax.ShapeDtypeStruct((B * n_q, C), x.dtype),
        cost_estimate=pl.CostEstimate(flops=flops2,
                                      transcendentals=B * n_q * hidden,
                                      bytes_accessed=bytes2),
    )(*tail_args)
    return out2d.reshape(B, n_q, C)


# ----------------------------- reference (pure JAX) --------------------------
def query_sa_block_ref(x, params, *, num_heads, eps=1e-5):
    B, C, H, W = x.shape
    N = H * W
    x_cl = jnp.transpose(x, (0, 2, 3, 1))
    xp = jnp.pad(x_cl, ((0, 0), (1, 1), (1, 1), (0, 0)))
    w9 = params["conv_w"].reshape(C, 9)               # [c, dh*3+dw]
    conv = jnp.zeros_like(x_cl)
    t = 0
    for dh in range(3):                               # depthwise 3x3 conv
        for dw in range(3):
            conv = conv + xp[:, dh:dh + H, dw:dw + W, :] * w9[:, t]
            t += 1
    y = x_cl + conv + params["conv_b"]
    y = y.reshape(B, N, C)

    def ln(z, g, b):
        mu = z.mean(-1, keepdims=True)
        var = ((z - mu) ** 2).mean(-1, keepdims=True)
        return (z - mu) / jnp.sqrt(var + eps) * g + b

    yn = ln(y, params["g1"], params["b1"])
    k = yn @ params["wk"]
    v = yn @ params["wv"]
    n_q = params["q"].shape[0]
    d = C // num_heads
    scale = float(d) ** -0.5
    qh = jnp.broadcast_to(params["q"], (B, n_q, C)).reshape(
        B, n_q, num_heads, d).transpose(0, 2, 1, 3)
    kh = k.reshape(B, N, num_heads, d).transpose(0, 2, 1, 3)
    vh = v.reshape(B, N, num_heads, d).transpose(0, 2, 1, 3)
    attn = jax.nn.softmax(
        jnp.einsum("bhqd,bhkd->bhqk", qh, kh) * scale, axis=-1)
    att = jnp.einsum("bhqk,bhkd->bhqd", attn, vh).transpose(
        0, 2, 1, 3).reshape(B, n_q, C)
    a = att @ params["wp"] + params["bp"]
    m = ln(a, params["g2"], params["b2"])
    h = jax.nn.gelu(m @ params["w1"] + params["bm1"], approximate=False)
    return a + h @ params["w2"] + params["bm2"]


def init_params(key, dim, num_heads, mlp_ratio=4.0, n_query=10,
                dtype=jnp.float32):
    """Synthetic params matching the torch module's shapes.

    Linear weights are stored pre-transposed as (in, out); conv weight keeps
    the torch depthwise layout (C, 1, 3, 3).
    """
    hidden = int(dim * mlp_ratio)
    ks = jax.random.split(key, 16)

    def u(k, shape, fan_in):
        lim = 1.0 / (float(fan_in) ** 0.5)
        return jax.random.uniform(k, shape, minval=-lim, maxval=lim,
                                  dtype=dtype)

    return dict(
        conv_w=u(ks[0], (dim, 1, 3, 3), 9),
        conv_b=u(ks[1], (dim,), 9),
        g1=1.0 + 0.1 * jax.random.normal(ks[2], (dim,), dtype),
        b1=0.1 * jax.random.normal(ks[3], (dim,), dtype),
        q=jax.random.normal(ks[4], (n_query, dim), dtype) * 0.5,
        wk=u(ks[5], (dim, dim), dim),          # qkv_bias=False
        wv=u(ks[6], (dim, dim), dim),
        wp=u(ks[7], (dim, dim), dim),
        bp=u(ks[8], (dim,), dim),
        g2=1.0 + 0.1 * jax.random.normal(ks[9], (dim,), dtype),
        b2=0.1 * jax.random.normal(ks[10], (dim,), dtype),
        w1=u(ks[11], (dim, hidden), dim),
        bm1=u(ks[12], (hidden,), dim),
        w2=u(ks[13], (hidden, dim), hidden),
        bm2=u(ks[14], (dim,), hidden),
    )


if __name__ == "__main__":
    key = jax.random.PRNGKey(0)
    kx, kp = jax.random.split(key)

    # Small but lane-aligned demo: dim=128, 8x8 spatial (64 tokens), 4 heads,
    # hidden = 4*dim = 512, batch=2 (parallel grid spans both v7x TensorCores).
    B, C, H, W = 2, 128, 8, 8
    num_heads = 4
    x = jax.random.normal(kx, (B, C, H, W), dtype=jnp.float32)
    params = init_params(kp, C, num_heads)

    ref = query_sa_block_ref(x, params, num_heads=num_heads)

    # f32-operand path: tight check against the pure-JAX reference.
    out_f32 = query_sa_block_pallas(x, params, num_heads=num_heads,
                                    matmul_dtype=jnp.float32)
    out_f32 = jax.block_until_ready(out_f32)
    assert out_f32.shape == (B, 10, C)
    assert jnp.allclose(out_f32, ref, atol=2e-2, rtol=2e-2), "f32 mismatch"

    # bf16-operand path (MXU-friendly, f32 accumulation): looser tolerance.
    out_bf16 = query_sa_block_pallas(x, params, num_heads=num_heads,
                                     matmul_dtype=jnp.bfloat16)
    out_bf16 = jax.block_until_ready(out_bf16)
    assert out_bf16.shape == (B, 10, C)
    assert jnp.allclose(out_bf16, ref, atol=1e-1, rtol=1e-1), "bf16 mismatch"

    print("KERNEL_OK")
</pallas_src>

<mosaic_0001>
module attributes {stable_mosaic.version = 11 : i64} {
  func.func @_tail_kernel(%arg0: memref<20x128xf32, #tpu.memory_space<vmem>>, %arg1: memref<128x128xf32, #tpu.memory_space<vmem>>, %arg2: memref<1x128xf32, #tpu.memory_space<vmem>>, %arg3: memref<1x128xf32, #tpu.memory_space<vmem>>, %arg4: memref<1x128xf32, #tpu.memory_space<vmem>>, %arg5: memref<128x512xf32, #tpu.memory_space<vmem>>, %arg6: memref<1x512xf32, #tpu.memory_space<vmem>>, %arg7: memref<512x128xf32, #tpu.memory_space<vmem>>, %arg8: memref<1x128xf32, #tpu.memory_space<vmem>>, %arg9: memref<20x128xf32, #tpu.memory_space<vmem>>) attributes {dimension_semantics = [], scalar_prefetch = 0 : i64, scratch_operands = 0 : i64, tpu.core_type = #tpu.core_type<tc>} {
    %c0 = arith.constant 0 : index
    %c0_0 = arith.constant 0 : index
    %0 = vector.load %arg0[%c0, %c0_0] : memref<20x128xf32, #tpu.memory_space<vmem>>, vector<20x128xf32>
    %c0_1 = arith.constant 0 : index
    %c0_2 = arith.constant 0 : index
    %1 = vector.load %arg1[%c0_1, %c0_2] : memref<128x128xf32, #tpu.memory_space<vmem>>, vector<128x128xf32>
    %cst = arith.constant dense<0.000000e+00> : vector<20x128xf32>
    %2 = tpu.matmul %0, %1, %cst {dimension_numbers = #tpu.dot_dimension_numbers<[1], [0], [0], [1], [0, 0, 1, 1], [], []>} : vector<20x128xf32>, vector<128x128xf32>, vector<20x128xf32> -> vector<20x128xf32>
    %c0_3 = arith.constant 0 : index
    %c0_4 = arith.constant 0 : index
    %3 = vector.load %arg2[%c0_3, %c0_4] : memref<1x128xf32, #tpu.memory_space<vmem>>, vector<1x128xf32>
    %4 = vector.broadcast %3 : vector<1x128xf32> to vector<20x128xf32>
    %5 = arith.addf %2, %4 : vector<20x128xf32>
    %c0_5 = arith.constant 0 : index
    %c0_6 = arith.constant 0 : index
    %6 = vector.load %arg3[%c0_5, %c0_6] : memref<1x128xf32, #tpu.memory_space<vmem>>, vector<1x128xf32>
    %c0_7 = arith.constant 0 : index
    %c0_8 = arith.constant 0 : index
    %7 = vector.load %arg4[%c0_7, %c0_8] : memref<1x128xf32, #tpu.memory_space<vmem>>, vector<1x128xf32>
    %cst_9 = arith.constant dense<0.000000e+00> : vector<20xf32>
    %8 = vector.multi_reduction <add>, %5, %cst_9 [1] : vector<20x128xf32> to vector<20xf32>
    %9 = vector.shape_cast %8 : vector<20xf32> to vector<20x1xf32>
    %cst_10 = arith.constant 1.280000e+02 : f32
    %10 = vector.broadcast %cst_10 : f32 to vector<20x1xf32>
    %11 = arith.divf %9, %10 : vector<20x1xf32>
    %12 = vector.broadcast %11 : vector<20x1xf32> to vector<20x128xf32>
    %13 = arith.subf %5, %12 : vector<20x128xf32>
    %14 = arith.mulf %13, %13 : vector<20x128xf32>
    %cst_11 = arith.constant dense<0.000000e+00> : vector<20xf32>
    %15 = vector.multi_reduction <add>, %14, %cst_11 [1] : vector<20x128xf32> to vector<20xf32>
    %16 = vector.shape_cast %15 : vector<20xf32> to vector<20x1xf32>
    %cst_12 = arith.constant 1.280000e+02 : f32
    %17 = vector.broadcast %cst_12 : f32 to vector<20x1xf32>
    %18 = arith.divf %16, %17 : vector<20x1xf32>
    %19 = vector.broadcast %11 : vector<20x1xf32> to vector<20x128xf32>
    %20 = arith.subf %5, %19 : vector<20x128xf32>
    %cst_13 = arith.constant 9.99999974E-6 : f32
    %21 = vector.broadcast %cst_13 : f32 to vector<20x1xf32>
    %22 = arith.addf %18, %21 : vector<20x1xf32>
    %23 = math.rsqrt %22 : vector<20x1xf32>
    %24 = vector.broadcast %23 : vector<20x1xf32> to vector<20x128xf32>
    %25 = arith.mulf %20, %24 : vector<20x128xf32>
    %26 = vector.broadcast %6 : vector<1x128xf32> to vector<20x128xf32>
    %27 = arith.mulf %25, %26 : vector<20x128xf32>
    %28 = vector.broadcast %7 : vector<1x128xf32> to vector<20x128xf32>
    %29 = arith.addf %27, %28 : vector<20x128xf32>
    %c0_14 = arith.constant 0 : index
    %c0_15 = arith.constant 0 : index
    %30 = vector.load %arg5[%c0_14, %c0_15] : memref<128x512xf32, #tpu.memory_space<vmem>>, vector<128x512xf32>
    %cst_16 = arith.constant dense<0.000000e+00> : vector<20x512xf32>
    %31 = tpu.matmul %29, %30, %cst_16 {dimension_numbers = #tpu.dot_dimension_numbers<[1], [0], [0], [1], [0, 0, 1, 1], [], []>} : vector<20x128xf32>, vector<128x512xf32>, vector<20x512xf32> -> vector<20x512xf32>
    %c0_17 = arith.constant 0 : index
    %c0_18 = arith.constant 0 : index
    %32 = vector.load %arg6[%c0_17, %c0_18] : memref<1x512xf32, #tpu.memory_space<vmem>>, vector<1x512xf32>
    %33 = vector.broadcast %32 : vector<1x512xf32> to vector<20x512xf32>
    %34 = arith.addf %31, %33 : vector<20x512xf32>
    %cst_19 = arith.constant 0.707106769 : f32
    %35 = vector.broadcast %cst_19 : f32 to vector<20x512xf32>
    %36 = arith.mulf %34, %35 : vector<20x512xf32>
    %37 = math.absf %36 : vector<20x512xf32>
    %cst_20 = arith.constant 0.327591091 : f32
    %38 = vector.broadcast %cst_20 : f32 to vector<20x512xf32>
    %39 = arith.mulf %38, %37 : vector<20x512xf32>
    %cst_21 = arith.constant 1.000000e+00 : f32
    %40 = vector.broadcast %cst_21 : f32 to vector<20x512xf32>
    %41 = arith.addf %40, %39 : vector<20x512xf32>
    %cst_22 = arith.constant 1.000000e+00 : f32
    %42 = vector.broadcast %cst_22 : f32 to vector<20x512xf32>
    %43 = arith.divf %42, %41 : vector<20x512xf32>
    %cst_23 = arith.constant 1.06140542 : f32
    %44 = vector.broadcast %cst_23 : f32 to vector<20x512xf32>
    %45 = arith.mulf %43, %44 : vector<20x512xf32>
    %cst_24 = arith.constant -1.45315206 : f32
    %46 = vector.broadcast %cst_24 : f32 to vector<20x512xf32>
    %47 = arith.addf %46, %45 : vector<20x512xf32>
    %48 = arith.mulf %43, %47 : vector<20x512xf32>
    %cst_25 = arith.constant 1.42141378 : f32
    %49 = vector.broadcast %cst_25 : f32 to vector<20x512xf32>
    %50 = arith.addf %49, %48 : vector<20x512xf32>
    %51 = arith.mulf %43, %50 : vector<20x512xf32>
    %cst_26 = arith.constant -0.284496725 : f32
    %52 = vector.broadcast %cst_26 : f32 to vector<20x512xf32>
    %53 = arith.addf %52, %51 : vector<20x512xf32>
    %54 = arith.mulf %43, %53 : vector<20x512xf32>
    %cst_27 = arith.constant 0.254829586 : f32
    %55 = vector.broadcast %cst_27 : f32 to vector<20x512xf32>
    %56 = arith.addf %55, %54 : vector<20x512xf32>
    %57 = arith.mulf %43, %56 : vector<20x512xf32>
    %cst_28 = arith.constant 0.000000e+00 : f32
    %58 = vector.broadcast %cst_28 : f32 to vector<20x512xf32>
    %59 = arith.subf %58, %37 : vector<20x512xf32>
    %60 = arith.mulf %59, %37 : vector<20x512xf32>
    %61 = math.exp %60 : vector<20x512xf32>
    %62 = arith.mulf %57, %61 : vector<20x512xf32>
    %cst_29 = arith.constant 1.000000e+00 : f32
    %63 = vector.broadcast %cst_29 : f32 to vector<20x512xf32>
    %64 = arith.subf %63, %62 : vector<20x512xf32>
    %cst_30 = arith.constant 0.000000e+00 : f32
    %65 = vector.broadcast %cst_30 : f32 to vector<20x512xf32>
    %66 = arith.cmpf olt, %36, %65 : vector<20x512xf32>
    %cst_31 = arith.constant 0.000000e+00 : f32
    %67 = vector.broadcast %cst_31 : f32 to vector<20x512xf32>
    %68 = arith.subf %67, %64 : vector<20x512xf32>
    %69 = arith.select %66, %68, %64 : vector<20x512xi1>, vector<20x512xf32>
    %cst_32 = arith.constant 5.000000e-01 : f32
    %70 = vector.broadcast %cst_32 : f32 to vector<20x512xf32>
    %71 = arith.mulf %70, %34 : vector<20x512xf32>
    %cst_33 = arith.constant 1.000000e+00 : f32
    %72 = vector.broadcast %cst_33 : f32 to vector<20x512xf32>
    %73 = arith.addf %72, %69 : vector<20x512xf32>
    %74 = arith.mulf %71, %73 : vector<20x512xf32>
    %c0_34 = arith.constant 0 : index
    %c0_35 = arith.constant 0 : index
    %75 = vector.load %arg7[%c0_34, %c0_35] : memref<512x128xf32, #tpu.memory_space<vmem>>, vector<512x128xf32>
    %cst_36 = arith.constant dense<0.000000e+00> : vector<20x128xf32>
    %76 = tpu.matmul %74, %75, %cst_36 {dimension_numbers = #tpu.dot_dimension_numbers<[1], [0], [0], [1], [0, 0, 1, 1], [], []>} : vector<20x512xf32>, vector<512x128xf32>, vector<20x128xf32> -> vector<20x128xf32>
    %c0_37 = arith.constant 0 : index
    %c0_38 = arith.constant 0 : index
    %77 = vector.load %arg8[%c0_37, %c0_38] : memref<1x128xf32, #tpu.memory_space<vmem>>, vector<1x128xf32>
    %78 = vector.broadcast %77 : vector<1x128xf32> to vector<20x128xf32>
    %79 = arith.addf %76, %78 : vector<20x128xf32>
    %80 = arith.addf %5, %79 : vector<20x128xf32>
    %c0_39 = arith.constant 0 : index
    %c0_40 = arith.constant 0 : index
    %81 = vector.load %arg9[%c0_39, %c0_40] : memref<20x128xf32, #tpu.memory_space<vmem>>, vector<20x128xf32>
    tpu.vector_store %arg9[%c0_39, %c0_40], %80 {strides = array<i32>} : memref<20x128xf32, #tpu.memory_space<vmem>>, vector<20x128xf32>,
    return
  }
}

module attributes {stable_mosaic.version = 11 : i64} {
  func.func @_attn_kernel(%arg0: i32, %arg1: memref<1x8x8x128xf32, #tpu.memory_space<vmem>>, %arg2: memref<9x128xf32, #tpu.memory_space<vmem>>, %arg3: memref<1x128xf32, #tpu.memory_space<vmem>>, %arg4: memref<1x128xf32, #tpu.memory_space<vmem>>, %arg5: memref<1x128xf32, #tpu.memory_space<vmem>>, %arg6: memref<40x128xf32, #tpu.memory_space<vmem>>, %arg7: memref<128x256xf32, #tpu.memory_space<vmem>>, %arg8: memref<4x128xf32, #tpu.memory_space<vmem>>, %arg9: memref<1x10x128xf32, #tpu.memory_space<vmem>>, %arg10: memref<10x10x128xf32, #tpu.memory_space<vmem>>) attributes {dimension_semantics = [#tpu.dimension_semantics<parallel>], iteration_bounds = array<i64: 2>, scalar_prefetch = 0 : i64, scratch_operands = 1 : i64, tpu.core_type = #tpu.core_type<tc>, window_params = [{transform_indices = @transform_0, window_bounds = array<i64: 1, 8, 8, 128>}, {pipeline_mode = #tpu.pipeline_mode<synchronous>, transform_indices = @transform_1, window_bounds = array<i64: 9, 128>}, {pipeline_mode = #tpu.pipeline_mode<synchronous>, transform_indices = @transform_2, window_bounds = array<i64: 1, 128>}, {pipeline_mode = #tpu.pipeline_mode<synchronous>, transform_indices = @transform_3, window_bounds = array<i64: 1, 128>}, {pipeline_mode = #tpu.pipeline_mode<synchronous>, transform_indices = @transform_4, window_bounds = array<i64: 1, 128>}, {pipeline_mode = #tpu.pipeline_mode<synchronous>, transform_indices = @transform_5, window_bounds = array<i64: 40, 128>}, {pipeline_mode = #tpu.pipeline_mode<synchronous>, transform_indices = @transform_6, window_bounds = array<i64: 128, 256>}, {pipeline_mode = #tpu.pipeline_mode<synchronous>, transform_indices = @transform_7, window_bounds = array<i64: 4, 128>}, {transform_indices = @transform_8, window_bounds = array<i64: 1, 10, 128>}]} {
    %c0 = arith.constant 0 : index
    %c0_0 = arith.constant 0 : index
    %c0_1 = arith.constant 0 : index
    %c0_2 = arith.constant 0 : index
    %0 = vector.load %arg1[%c0, %c0_0, %c0_1, %c0_2] : memref<1x8x8x128xf32, #tpu.memory_space<vmem>>, vector<1x8x8x128xf32>
    %1 = vector.shape_cast %0 : vector<1x8x8x128xf32> to vector<8x8x128xf32>
    %cst = arith.constant 0.000000e+00 : f32
    %2 = vector.broadcast %cst : f32 to vector<10x10x128xf32>
    %c0_3 = arith.constant 0 : index
    %c0_4 = arith.constant 0 : index
    %c0_5 = arith.constant 0 : index
    %3 = vector.load %arg10[%c0_3, %c0_4, %c0_5] : memref<10x10x128xf32, #tpu.memory_space<vmem>>, vector<10x10x128xf32>
    tpu.vector_store %arg10[%c0_3, %c0_4, %c0_5], %2 {strides = array<i32>} : memref<10x10x128xf32, #tpu.memory_space<vmem>>, vector<10x10x128xf32>,
    %c1 = arith.constant 1 : index
    %c1_6 = arith.constant 1 : index
    %c0_7 = arith.constant 0 : index
    %4 = vector.load %arg10[%c1, %c1_6, %c0_7] : memref<10x10x128xf32, #tpu.memory_space<vmem>>, vector<8x8x128xf32>
    tpu.vector_store %arg10[%c1, %c1_6, %c0_7], %1 {strides = array<i32>} : memref<10x10x128xf32, #tpu.memory_space<vmem>>, vector<8x8x128xf32>,
    %c0_8 = arith.constant 0 : index
    %c0_9 = arith.constant 0 : index
    %c0_10 = arith.constant 0 : index
    %5 = vector.load %arg10[%c0_8, %c0_9, %c0_10] : memref<10x10x128xf32, #tpu.memory_space<vmem>>, vector<10x8x128xf32>
    %c0_11 = arith.constant 0 : index
    %c1_12 = arith.constant 1 : index
    %c0_13 = arith.constant 0 : index
    %6 = vector.load %arg10[%c0_11, %c1_12, %c0_13] : memref<10x10x128xf32, #tpu.memory_space<vmem>>, vector<10x8x128xf32>
    %c0_14 = arith.constant 0 : index
    %c2 = arith.constant 2 : index
    %c0_15 = arith.constant 0 : index
    %7 = vector.load %arg10[%c0_14, %c2, %c0_15] : memref<10x10x128xf32, #tpu.memory_space<vmem>>, vector<10x8x128xf32>
    %c0_16 = arith.constant 0 : index
    %c0_17 = arith.constant 0 : index
    %8 = vector.load %arg2[%c0_16, %c0_17] : memref<9x128xf32, #tpu.memory_space<vmem>>, vector<9x128xf32>
    %cst_18 = arith.constant 0.000000e+00 : f32
    %9 = vector.broadcast %cst_18 : f32 to vector<8x8x128xf32>
    %10 = vector.extract_strided_slice %5 {offsets = [0, 0, 0], sizes = [8, 8, 128], strides = [1, 1, 1]} : vector<10x8x128xf32> to vector<8x8x128xf32>
    %11 = vector.extract_strided_slice %8 {offsets = [0, 0], sizes = [1, 128], strides = [1, 1]} : vector<9x128xf32> to vector<1x128xf32>
    %12 = vector.shape_cast %11 : vector<1x128xf32> to vector<128xf32>
    %13 = vector.shape_cast %12 : vector<128xf32> to vector<1x1x128xf32>
    %14 = vector.broadcast %13 : vector<1x1x128xf32> to vector<8x8x128xf32>
    %15 = arith.mulf %10, %14 : vector<8x8x128xf32>
    %16 = arith.addf %9, %15 : vector<8x8x128xf32>
    %17 = vector.extract_strided_slice %6 {offsets = [0, 0, 0], sizes = [8, 8, 128], strides = [1, 1, 1]} : vector<10x8x128xf32> to vector<8x8x128xf32>
    %18 = vector.extract_strided_slice %8 {offsets = [1, 0], sizes = [1, 128], strides = [1, 1]} : vector<9x128xf32> to vector<1x128xf32>
    %19 = vector.shape_cast %18 : vector<1x128xf32> to vector<128xf32>
    %20 = vector.shape_cast %19 : vector<128xf32> to vector<1x1x128xf32>
    %21 = vector.broadcast %20 : vector<1x1x128xf32> to vector<8x8x128xf32>
    %22 = arith.mulf %17, %21 : vector<8x8x128xf32>
    %23 = arith.addf %16, %22 : vector<8x8x128xf32>
    %24 = vector.extract_strided_slice %7 {offsets = [0, 0, 0], sizes = [8, 8, 128], strides = [1, 1, 1]} : vector<10x8x128xf32> to vector<8x8x128xf32>
    %25 = vector.extract_strided_slice %8 {offsets = [2, 0], sizes = [1, 128], strides = [1, 1]} : vector<9x128xf32> to vector<1x128xf32>
    %26 = vector.shape_cast %25 : vector<1x128xf32> to vector<128xf32>
    %27 = vector.shape_cast %26 : vector<128xf32> to vector<1x1x128xf32>
    %28 = vector.broadcast %27 : vector<1x1x128xf32> to vector<8x8x128xf32>
    %29 = arith.mulf %24, %28 : vector<8x8x128xf32>
    %30 = arith.addf %23, %29 : vector<8x8x128xf32>
    %31 = vector.extract_strided_slice %5 {offsets = [1, 0, 0], sizes = [8, 8, 128], strides = [1, 1, 1]} : vector<10x8x128xf32> to vector<8x8x128xf32>
    %32 = vector.extract_strided_slice %8 {offsets = [3, 0], sizes = [1, 128], strides = [1, 1]} : vector<9x128xf32> to vector<1x128xf32>
    %33 = vector.shape_cast %32 : vector<1x128xf32> to vector<128xf32>
    %34 = vector.shape_cast %33 : vector<128xf32> to vector<1x1x128xf32>
    %35 = vector.broadcast %34 : vector<1x1x128xf32> to vector<8x8x128xf32>
    %36 = arith.mulf %31, %35 : vector<8x8x128xf32>
    %37 = arith.addf %30, %36 : vector<8x8x128xf32>
    %38 = vector.extract_strided_slice %6 {offsets = [1, 0, 0], sizes = [8, 8, 128], strides = [1, 1, 1]} : vector<10x8x128xf32> to vector<8x8x128xf32>
    %39 = vector.extract_strided_slice %8 {offsets = [4, 0], sizes = [1, 128], strides = [1, 1]} : vector<9x128xf32> to vector<1x128xf32>
    %40 = vector.shape_cast %39 : vector<1x128xf32> to vector<128xf32>
    %41 = vector.shape_cast %40 : vector<128xf32> to vector<1x1x128xf32>
    %42 = vector.broadcast %41 : vector<1x1x128xf32> to vector<8x8x128xf32>
    %43 = arith.mulf %38, %42 : vector<8x8x128xf32>
    %44 = arith.addf %37, %43 : vector<8x8x128xf32>
    %45 = vector.extract_strided_slice %7 {offsets = [1, 0, 0], sizes = [8, 8, 128], strides = [1, 1, 1]} : vector<10x8x128xf32> to vector<8x8x128xf32>
    %46 = vector.extract_strided_slice %8 {offsets = [5, 0], sizes = [1, 128], strides = [1, 1]} : vector<9x128xf32> to vector<1x128xf32>
    %47 = vector.shape_cast %46 : vector<1x128xf32> to vector<128xf32>
    %48 = vector.shape_cast %47 : vector<128xf32> to vector<1x1x128xf32>
    %49 = vector.broadcast %48 : vector<1x1x128xf32> to vector<8x8x128xf32>
    %50 = arith.mulf %45, %49 : vector<8x8x128xf32>
    %51 = arith.addf %44, %50 : vector<8x8x128xf32>
    %52 = vector.extract_strided_slice %5 {offsets = [2, 0, 0], sizes = [8, 8, 128], strides = [1, 1, 1]} : vector<10x8x128xf32> to vector<8x8x128xf32>
    %53 = vector.extract_strided_slice %8 {offsets = [6, 0], sizes = [1, 128], strides = [1, 1]} : vector<9x128xf32> to vector<1x128xf32>
    %54 = vector.shape_cast %53 : vector<1x128xf32> to vector<128xf32>
    %55 = vector.shape_cast %54 : vector<128xf32> to vector<1x1x128xf32>
    %56 = vector.broadcast %55 : vector<1x1x128xf32> to vector<8x8x128xf32>
    %57 = arith.mulf %52, %56 : vector<8x8x128xf32>
    %58 = arith.addf %51, %57 : vector<8x8x128xf32>
    %59 = vector.extract_strided_slice %6 {offsets = [2, 0, 0], sizes = [8, 8, 128], strides = [1, 1, 1]} : vector<10x8x128xf32> to vector<8x8x128xf32>
    %60 = vector.extract_strided_slice %8 {offsets = [7, 0], sizes = [1, 128], strides = [1, 1]} : vector<9x128xf32> to vector<1x128xf32>
    %61 = vector.shape_cast %60 : vector<1x128xf32> to vector<128xf32>
    %62 = vector.shape_cast %61 : vector<128xf32> to vector<1x1x128xf32>
    %63 = vector.broadcast %62 : vector<1x1x128xf32> to vector<8x8x128xf32>
    %64 = arith.mulf %59, %63 : vector<8x8x128xf32>
    %65 = arith.addf %58, %64 : vector<8x8x128xf32>
    %66 = vector.extract_strided_slice %7 {offsets = [2, 0, 0], sizes = [8, 8, 128], strides = [1, 1, 1]} : vector<10x8x128xf32> to vector<8x8x128xf32>
    %67 = vector.extract_strided_slice %8 {offsets = [8, 0], sizes = [1, 128], strides = [1, 1]} : vector<9x128xf32> to vector<1x128xf32>
    %68 = vector.shape_cast %67 : vector<1x128xf32> to vector<128xf32>
    %69 = vector.shape_cast %68 : vector<128xf32> to vector<1x1x128xf32>
    %70 = vector.broadcast %69 : vector<1x1x128xf32> to vector<8x8x128xf32>
    %71 = arith.mulf %66, %70 : vector<8x8x128xf32>
    %72 = arith.addf %65, %71 : vector<8x8x128xf32>
    %73 = arith.addf %1, %72 : vector<8x8x128xf32>
    %74 = vector.shape_cast %73 : vector<8x8x128xf32> to vector<64x128xf32>
    %c0_19 = arith.constant 0 : index
    %c0_20 = arith.constant 0 : index
    %75 = vector.load %arg3[%c0_19, %c0_20] : memref<1x128xf32, #tpu.memory_space<vmem>>, vector<1x128xf32>
    %76 = vector.broadcast %75 : vector<1x128xf32> to vector<64x128xf32>
    %77 = arith.addf %74, %76 : vector<64x128xf32>
    %c0_21 = arith.constant 0 : index
    %c0_22 = arith.constant 0 : index
    %78 = vector.load %arg4[%c0_21, %c0_22] : memref<1x128xf32, #tpu.memory_space<vmem>>, vector<1x128xf32>
    %c0_23 = arith.constant 0 : index
    %c0_24 = arith.constant 0 : index
    %79 = vector.load %arg5[%c0_23, %c0_24] : memref<1x128xf32, #tpu.memory_space<vmem>>, vector<1x128xf32>
    %cst_25 = arith.constant dense<0.000000e+00> : vector<64xf32>
    %80 = vector.multi_reduction <add>, %77, %cst_25 [1] : vector<64x128xf32> to vector<64xf32>
    %81 = vector.shape_cast %80 : vector<64xf32> to vector<64x1xf32>
    %cst_26 = arith.constant 1.280000e+02 : f32
    %82 = vector.broadcast %cst_26 : f32 to vector<64x1xf32>
    %83 = arith.divf %81, %82 : vector<64x1xf32>
    %84 = vector.broadcast %83 : vector<64x1xf32> to vector<64x128xf32>
    %85 = arith.subf %77, %84 : vector<64x128xf32>
    %86 = arith.mulf %85, %85 : vector<64x128xf32>
    %cst_27 = arith.constant dense<0.000000e+00> : vector<64xf32>
    %87 = vector.multi_reduction <add>, %86, %cst_27 [1] : vector<64x128xf32> to vector<64xf32>
    %88 = vector.shape_cast %87 : vector<64xf32> to vector<64x1xf32>
    %cst_28 = arith.constant 1.280000e+02 : f32
    %89 = vector.broadcast %cst_28 : f32 to vector<64x1xf32>
    %90 = arith.divf %88, %89 : vector<64x1xf32>
    %91 = vector.broadcast %83 : vector<64x1xf32> to vector<64x128xf32>
    %92 = arith.subf %77, %91 : vector<64x128xf32>
    %cst_29 = arith.constant 9.99999974E-6 : f32
    %93 = vector.broadcast %cst_29 : f32 to vector<64x1xf32>
    %94 = arith.addf %90, %93 : vector<64x1xf32>
    %95 = math.rsqrt %94 : vector<64x1xf32>
    %96 = vector.broadcast %95 : vector<64x1xf32> to vector<64x128xf32>
    %97 = arith.mulf %92, %96 : vector<64x128xf32>
    %98 = vector.broadcast %78 : vector<1x128xf32> to vector<64x128xf32>
    %99 = arith.mulf %97, %98 : vector<64x128xf32>
    %100 = vector.broadcast %79 : vector<1x128xf32> to vector<64x128xf32>
    %101 = arith.addf %99, %100 : vector<64x128xf32>
    %c0_30 = arith.constant 0 : index
    %c0_31 = arith.constant 0 : index
    %102 = vector.load %arg7[%c0_30, %c0_31] : memref<128x256xf32, #tpu.memory_space<vmem>>, vector<128x256xf32>
    %cst_32 = arith.constant dense<0.000000e+00> : vector<64x256xf32>
    %103 = tpu.matmul %101, %102, %cst_32 {dimension_numbers = #tpu.dot_dimension_numbers<[1], [0], [0], [1], [0, 0, 1, 1], [], []>} : vector<64x128xf32>, vector<128x256xf32>, vector<64x256xf32> -> vector<64x256xf32>
    %104 = vector.extract_strided_slice %103 {offsets = [0, 0], sizes = [64, 128], strides = [1, 1]} : vector<64x256xf32> to vector<64x128xf32>
    %105 = vector.extract_strided_slice %103 {offsets = [0, 128], sizes = [64, 128], strides = [1, 1]} : vector<64x256xf32> to vector<64x128xf32>
    %c0_33 = arith.constant 0 : index
    %c0_34 = arith.constant 0 : index
    %106 = vector.load %arg6[%c0_33, %c0_34] : memref<40x128xf32, #tpu.memory_space<vmem>>, vector<40x128xf32>
    %cst_35 = arith.constant dense<0.000000e+00> : vector<40x64xf32>
    %107 = tpu.matmul %106, %104, %cst_35 {dimension_numbers = #tpu.dot_dimension_numbers<[1], [1], [0], [0], [0, 0, 1, 0], [], []>} : vector<40x128xf32>, vector<64x128xf32>, vector<40x64xf32> -> vector<40x64xf32>
    %cst_36 = arith.constant dense<0xFF800000> : vector<40xf32>
    %108 = vector.multi_reduction <maximumf>, %107, %cst_36 [1] : vector<40x64xf32> to vector<40xf32>
    %109 = vector.shape_cast %108 : vector<40xf32> to vector<40x1xf32>
    %110 = vector.broadcast %109 : vector<40x1xf32> to vector<40x64xf32>
    %111 = arith.subf %107, %110 : vector<40x64xf32>
    %112 = math.exp %111 : vector<40x64xf32>
    %cst_37 = arith.constant dense<0.000000e+00> : vector<40xf32>
    %113 = vector.multi_reduction <add>, %112, %cst_37 [1] : vector<40x64xf32> to vector<40xf32>
    %114 = vector.shape_cast %113 : vector<40xf32> to vector<40x1xf32>
    %115 = vector.broadcast %114 : vector<40x1xf32> to vector<40x64xf32>
    %116 = arith.divf %112, %115 : vector<40x64xf32>
    %cst_38 = arith.constant dense<0.000000e+00> : vector<40x128xf32>
    %117 = tpu.matmul %116, %105, %cst_38 {dimension_numbers = #tpu.dot_dimension_numbers<[1], [0], [0], [1], [0, 0, 1, 1], [], []>} : vector<40x64xf32>, vector<64x128xf32>, vector<40x128xf32> -> vector<40x128xf32>
    %118 = vector.extract_strided_slice %117 {offsets = [0, 0], sizes = [10, 128], strides = [1, 1]} : vector<40x128xf32> to vector<10x128xf32>
    %c0_39 = arith.constant 0 : index
    %c0_40 = arith.constant 0 : index
    %119 = vector.load %arg8[%c0_39, %c0_40] : memref<4x128xf32, #tpu.memory_space<vmem>>, vector<1x128xf32>
    %120 = vector.shape_cast %119 : vector<1x128xf32> to vector<128xf32>
    %121 = vector.shape_cast %120 : vector<128xf32> to vector<1x128xf32>
    %122 = vector.broadcast %121 : vector<1x128xf32> to vector<10x128xf32>
    %123 = arith.mulf %118, %122 : vector<10x128xf32>
    %124 = vector.extract_strided_slice %117 {offsets = [10, 0], sizes = [10, 128], strides = [1, 1]} : vector<40x128xf32> to vector<10x128xf32>
    %c1_41 = arith.constant 1 : index
    %c0_42 = arith.constant 0 : index
    %125 = vector.load %arg8[%c1_41, %c0_42] : memref<4x128xf32, #tpu.memory_space<vmem>>, vector<1x128xf32>
    %126 = vector.shape_cast %125 : vector<1x128xf32> to vector<128xf32>
    %127 = vector.shape_cast %126 : vector<128xf32> to vector<1x128xf32>
    %128 = vector.broadcast %127 : vector<1x128xf32> to vector<10x128xf32>
    %129 = arith.mulf %124, %128 : vector<10x128xf32>
    %130 = arith.addf %123, %129 : vector<10x128xf32>
    %131 = vector.extract_strided_slice %117 {offsets = [20, 0], sizes = [10, 128], strides = [1, 1]} : vector<40x128xf32> to vector<10x128xf32>
    %c2_43 = arith.constant 2 : index
    %c0_44 = arith.constant 0 : index
    %132 = vector.load %arg8[%c2_43, %c0_44] : memref<4x128xf32, #tpu.memory_space<vmem>>, vector<1x128xf32>
    %133 = vector.shape_cast %132 : vector<1x128xf32> to vector<128xf32>
    %134 = vector.shape_cast %133 : vector<128xf32> to vector<1x128xf32>
    %135 = vector.broadcast %134 : vector<1x128xf32> to vector<10x128xf32>
    %136 = arith.mulf %131, %135 : vector<10x128xf32>
    %137 = arith.addf %130, %136 : vector<10x128xf32>
    %138 = vector.extract_strided_slice %117 {offsets = [30, 0], sizes = [10, 128], strides = [1, 1]} : vector<40x128xf32> to vector<10x128xf32>
    %c3 = arith.constant 3 : index
    %c0_45 = arith.constant 0 : index
    %139 = vector.load %arg8[%c3, %c0_45] : memref<4x128xf32, #tpu.memory_space<vmem>>, vector<1x128xf32>
    %140 = vector.shape_cast %139 : vector<1x128xf32> to vector<128xf32>
    %141 = vector.shape_cast %140 : vector<128xf32> to vector<1x128xf32>
    %142 = vector.broadcast %141 : vector<1x128xf32> to vector<10x128xf32>
    %143 = arith.mulf %138, %142 : vector<10x128xf32>
    %144 = arith.addf %137, %143 : vector<10x128xf32>
    %c0_46 = arith.constant 0 : index
    %c0_47 = arith.constant 0 : index
    %c0_48 = arith.constant 0 : index
    %145 = vector.load %arg9[%c0_46, %c0_47, %c0_48] : memref<1x10x128xf32, #tpu.memory_space<vmem>>, vector<1x10x128xf32>
    %146 = vector.shape_cast %145 : vector<1x10x128xf32> to vector<10x128xf32>
    %147 = vector.shape_cast %144 : vector<10x128xf32> to vector<1x10x128xf32>
    tpu.vector_store %arg9[%c0_46, %c0_47, %c0_48], %147 {strides = array<i32>} : memref<1x10x128xf32, #tpu.memory_space<vmem>>, vector<1x10x128xf32>,
    return
  }
  func.func @transform_0(%arg0: i32) -> (i32, i32, i32, i32) {
    %c0_i32 = arith.constant 0 : i32
    %c0_i32_0 = arith.constant 0 : i32
    %c0_i32_1 = arith.constant 0 : i32
    %c0_i32_2 = arith.constant 0 : i32
    return %arg0, %c0_i32, %c0_i32_0, %c0_i32_1 : i32, i32, i32, i32
  }
  func.func @transform_1(%arg0: i32) -> (i32, i32) {
    %c0_i32 = arith.constant 0 : i32
    %c0_i32_0 = arith.constant 0 : i32
    %c0_i32_1 = arith.constant 0 : i32
    return %c0_i32, %c0_i32_0 : i32, i32
  }
  func.func @transform_2(%arg0: i32) -> (i32, i32) {
    %c0_i32 = arith.constant 0 : i32
    %c0_i32_0 = arith.constant 0 : i32
    %c0_i32_1 = arith.constant 0 : i32
    return %c0_i32, %c0_i32_0 : i32, i32
  }
  func.func @transform_3(%arg0: i32) -> (i32, i32) {
    %c0_i32 = arith.constant 0 : i32
    %c0_i32_0 = arith.constant 0 : i32
    %c0_i32_1 = arith.constant 0 : i32
    return %c0_i32, %c0_i32_0 : i32, i32
  }
  func.func @transform_4(%arg0: i32) -> (i32, i32) {
    %c0_i32 = arith.constant 0 : i32
    %c0_i32_0 = arith.constant 0 : i32
    %c0_i32_1 = arith.constant 0 : i32
    return %c0_i32, %c0_i32_0 : i32, i32
  }
  func.func @transform_5(%arg0: i32) -> (i32, i32) {
    %c0_i32 = arith.constant 0 : i32
    %c0_i32_0 = arith.constant 0 : i32
    %c0_i32_1 = arith.constant 0 : i32
    return %c0_i32, %c0_i32_0 : i32, i32
  }
  func.func @transform_6(%arg0: i32) -> (i32, i32) {
    %c0_i32 = arith.constant 0 : i32
    %c0_i32_0 = arith.constant 0 : i32
    %c0_i32_1 = arith.constant 0 : i32
    return %c0_i32, %c0_i32_0 : i32, i32
  }
  func.func @transform_7(%arg0: i32) -> (i32, i32) {
    %c0_i32 = arith.constant 0 : i32
    %c0_i32_0 = arith.constant 0 : i32
    %c0_i32_1 = arith.constant 0 : i32
    return %c0_i32, %c0_i32_0 : i32, i32
  }
  func.func @transform_8(%arg0: i32) -> (i32, i32, i32) {
    %c0_i32 = arith.constant 0 : i32
    %c0_i32_0 = arith.constant 0 : i32
    %c0_i32_1 = arith.constant 0 : i32
    return %arg0, %c0_i32, %c0_i32_0 : i32, i32, i32
  }
}

</mosaic_0001>

<llo_original>
// kernel: mul.15
$region0: #{mul.15}
  %s0 = inlined_call_operand.vmem [shape: f32[10,128], index: 0, kind: input, shape index: {}]
  %s1 = inlined_call_operand.vmem [shape: f32[10,4,32], index: 1, kind: output, shape index: {}]
  $region1: #{mul.15} parent=0
    #allocation0 [shape = 'u8[40960]{0}', space=vmem, size = 0xa000, scoped, tag = 'scoped mem for output reshape']
    %v2 = vld [vmem:[%s0] sm:$0xff]
    %vm3 = vcmask 261120
    %4 = vst.msk [vmem:[#allocation0] ss:$8 sm:$0xf] %vm3, %v2
    %5 = vst.msk [vmem:[#allocation0] ss:$8 sm:$0xf0] %vm3, %v2
    %s6 = scalar_lea.vmem %s0, 8
    %v7 = vld [vmem:[%s6] sm:$0x3]
    %vm8 = vcmask 261120
    %s9 = scalar_lea.vmem [#allocation0], 64
    %10 = vst.msk [vmem:[%s9] ss:$8 sm:$0x3] %vm8, %v7
    %v11 = vld [vmem:[%s0] sm:$0xff]
    %12 = vrot.lane.b32.xlu0 %v11, 96
    %v13 = vpop.permute.xlu0 %12
    %vm14 = vcmask 261120
    %s15 = scalar_lea.vmem [#allocation0], 1
    %16 = vst.msk [vmem:[%s15] ss:$8 sm:$0xf] %vm14, %v13
    %s17 = scalar_lea.vmem [#allocation0], 1
    %18 = vst.msk [vmem:[%s17] ss:$8 sm:$0xf0] %vm14, %v13
    %s19 = scalar_lea.vmem %s0, 8
    %v20 = vld [vmem:[%s19] sm:$0x3]
    %21 = vrot.lane.b32.xlu0 %v20, 96
    %v22 = vpop.permute.xlu0 %21
    %vm23 = vcmask 261120
    %s24 = scalar_lea.vmem [#allocation0], 65
    %25 = vst.msk [vmem:[%s24] ss:$8 sm:$0x3] %vm23, %v22
    %v26 = vld [vmem:[%s0] sm:$0xff]
    %27 = vrot.lane.b32.xlu0 %v26, 64
    %v28 = vpop.permute.xlu0 %27
    %vm29 = vcmask 261120
    %s30 = scalar_lea.vmem [#allocation0], 2
    %31 = vst.msk [vmem:[%s30] ss:$8 sm:$0xf] %vm29, %v28
    %s32 = scalar_lea.vmem [#allocation0], 2
    %33 = vst.msk [vmem:[%s32] ss:$8 sm:$0xf0] %vm29, %v28
    %s34 = scalar_lea.vmem %s0, 8
    %v35 = vld [vmem:[%s34] sm:$0x3]
    %36 = vrot.lane.b32.xlu0 %v35, 64
    %v37 = vpop.permute.xlu0 %36
    %vm38 = vcmask 261120
    %s39 = scalar_lea.vmem [#allocation0], 66
    %40 = vst.msk [vmem:[%s39] ss:$8 sm:$0x3] %vm38, %v37
    %v41 = vld [vmem:[%s0] sm:$0xff]
    %42 = vrot.lane.b32.xlu0 %v41, 32
    %v43 = vpop.permute.xlu0 %42
    %vm44 = vcmask 261120
    %s45 = scalar_lea.vmem [#allocation0], 3
    %46 = vst.msk [vmem:[%s45] ss:$8 sm:$0xf] %vm44, %v43
    %s47 = scalar_lea.vmem [#allocation0], 3
    %48 = vst.msk [vmem:[%s47] ss:$8 sm:$0xf0] %vm44, %v43
    %s49 = scalar_lea.vmem %s0, 8
    %v50 = vld [vmem:[%s49] sm:$0x3]
    %51 = vrot.lane.b32.xlu0 %v50, 32
    %v52 = vpop.permute.xlu0 %51
    %vm53 = vcmask 261120
    %s54 = scalar_lea.vmem [#allocation0], 67
    %55 = vst.msk [vmem:[%s54] ss:$8 sm:$0x3] %vm53, %v52
    %s57 = sshllo.u32 0, 4
    %v59 = vld [vmem:[#allocation0] sm:%s57]
    %s60 = sshllo.u32 0, 4
    %61 = vst [vmem:[%s1] sm:%s60] %v59
    %s62 = scalar_lea.vmem [#allocation0], 8
    %v63 = vld [vmem:[%s62] sm:%s57]
    %s64 = sshllo.u32 0, 4
    %s65 = scalar_lea.vmem %s1, 4
    %66 = vst [vmem:[%s65] sm:%s64] %v63
    %s67 = scalar_lea.vmem [#allocation0], 16
    %v68 = vld [vmem:[%s67] sm:%s57]
    %s69 = sshllo.u32 0, 4
    %s70 = smul.addr 4, 2
    %s71 = scalar_lea.vmem %s1, %s70
    %72 = vst [vmem:[%s71] sm:%s69] %v68
    %s73 = scalar_lea.vmem [#allocation0], 24
    %v74 = vld [vmem:[%s73] sm:%s57]
    %s75 = sshllo.u32 0, 4
    %s76 = smul.addr 4, 3
    %s77 = scalar_lea.vmem %s1, %s76
    %78 = vst [vmem:[%s77] sm:%s75] %v74
    %s79 = scalar_lea.vmem [#allocation0], 32
    %v80 = vld [vmem:[%s79] sm:%s57]
    %s81 = sshllo.u32 0, 4
    %s82 = smul.addr 4, 4
    %s83 = scalar_lea.vmem %s1, %s82
    %84 = vst [vmem:[%s83] sm:%s81] %v80
    %s85 = scalar_lea.vmem [#allocation0], 40
    %v86 = vld [vmem:[%s85] sm:%s57]
    %s87 = sshllo.u32 0, 4
    %s88 = smul.addr 4, 5
    %s89 = scalar_lea.vmem %s1, %s88
    %90 = vst [vmem:[%s89] sm:%s87] %v86
    %s91 = scalar_lea.vmem [#allocation0], 48
    %v92 = vld [vmem:[%s91] sm:%s57]
    %s93 = sshllo.u32 0, 4
    %s94 = smul.addr 4, 6
    %s95 = scalar_lea.vmem %s1, %s94
    %96 = vst [vmem:[%s95] sm:%s93] %v92
    %s97 = scalar_lea.vmem [#allocation0], 56
    %v98 = vld [vmem:[%s97] sm:%s57]
    %s99 = sshllo.u32 0, 4
    %s100 = smul.addr 4, 7
    %s101 = scalar_lea.vmem %s1, %s100
    %102 = vst [vmem:[%s101] sm:%s99] %v98
    %s103 = scalar_lea.vmem [#allocation0], 64
    %v104 = vld [vmem:[%s103] sm:%s57]
    %s105 = sshllo.u32 0, 4
    %s106 = smul.addr 4, 8
    %s107 = scalar_lea.vmem %s1, %s106
    %108 = vst [vmem:[%s107] sm:%s105] %v104
    %s109 = scalar_lea.vmem [#allocation0], 72
    %v110 = vld [vmem:[%s109] sm:%s57]
    %s111 = sshllo.u32 0, 4
    %s112 = smul.addr 4, 9
    %s113 = scalar_lea.vmem %s1, %s112
    %114 = vst [vmem:[%s113] sm:%s111] %v110

// kernel: query_sa_block_pallas.2
$region0: #{query_sa_block_pallas.2}
  #allocation0 [shape = 'u32[]', space=smem, size = 0x4, offset = 0x4, fixed_abs, tag = 'smem constant byte address 0x4 - core index']
  #allocation1 [shape = 'u32[144,128]{1,0:T(1,128)}', space=vmem, size = 0x12000, scoped, tag = 'internal scratch']
  #allocation2 [shape = 'f32[10,10,128]{2,1,0:T(8,128)}', space=vmem, size = 0x14000, scoped, tag = 'scratch operand']
  %s0 = inlined_call_operand.vmem [shape: f32[2,8,8,128], index: 0, kind: input, shape index: {}]
  %s1 = inlined_call_operand.vmem [shape: f32[9,128], index: 1, kind: input, shape index: {}]
  %s2 = inlined_call_operand.vmem [shape: f32[1,128], index: 2, kind: input, shape index: {}]
  %s3 = inlined_call_operand.vmem [shape: f32[1,128], index: 3, kind: input, shape index: {}]
  %s4 = inlined_call_operand.vmem [shape: f32[1,128], index: 4, kind: input, shape index: {}]
  %s5 = inlined_call_operand.vmem [shape: f32[40,128], index: 5, kind: input, shape index: {}]
  %s6 = inlined_call_operand.vmem [shape: f32[128,256], index: 6, kind: input, shape index: {}]
  %s7 = inlined_call_operand.vmem [shape: f32[4,128], index: 7, kind: input, shape index: {}]
  %s8 = inlined_call_operand.vmem [shape: f32[2,10,128], index: 8, kind: output, shape index: {}]
  %s9 = sld [smem:[#allocation0]]
  $region65: #{query_sa_block_pallas.2} parent=0
    _
  %s11 = ssub.s32 1, %s9
  %s12 = scalar_select 0, %s11, %s9
  loop: start=0, step=1, limit=4
  $region2: #{query_sa_block_pallas.2} parent=0 // loop_pre_header
    _
  $region3: #{query_sa_block_pallas.2} parent=0 // loop_header
    %s14 = sphi 0, %s18
    %p15 = scmp.ge.s32.totalorder %s14, 4
    %s24 = sphi 0, %s26
    %s27 = sphi 0, %s24
    %s28 = sphi 0, %s27
    %s44 = sphi 0, %s28
    %s48 = sphi 0, %s48
    %s50 = sphi 0, %s48
    %s51 = sphi 0, %s50
    %s65 = sphi 0, %s51
    %s69 = sphi 0, %s69
    %s71 = sphi 0, %s69
    %s72 = sphi 0, %s71
    %s86 = sphi 0, %s72
    %s90 = sphi 0, %s90
    %s92 = sphi 0, %s90
    %s93 = sphi 0, %s92
    %s107 = sphi 0, %s93
    %s111 = sphi 0, %s111
    %s113 = sphi 0, %s111
    %s114 = sphi 0, %s113
    %s128 = sphi 0, %s114
    %s132 = sphi 0, %s132
    %s134 = sphi 0, %s132
    %s135 = sphi 0, %s134
    %s149 = sphi 0, %s135
    %s153 = sphi 0, %s153
    %s155 = sphi 0, %s153
    %s156 = sphi 0, %s155
    %s170 = sphi 0, %s156
    %s174 = sphi 0, %s174
    %s176 = sphi 0, %s174
    %s177 = sphi 0, %s176
    %s191 = sphi 0, %s177
    %s197 = sphi 0, %s199
    %s200 = sphi 0, %s197
    %s201 = sphi 0, %s200
    %s217 = sphi 0, %s201
  $region4: #{query_sa_block_pallas.2} parent=0 // loop_header_branch
    %17 = sbr.rel (%p15) target = $region8
  $region5: #{query_sa_block_pallas.2} parent=0 // loop_body
    %s19 = ssub.s32 %s14, 1
    %s20 = ssub.s32 %s14, 2
    %s21 = sadd.s32 %s14, 1
    %s22 = ssub.s32 %s14, %s21
    %p23 = scmp.eq.s32.totalorder %s22, 0
    %s25 = sadd.s32 %s24, 1
    %s26 = scalar_select %p23, %s24, %s25
    %p29 = pneg %p23
    %p30 = scmp.eq.s32.totalorder %s14, 1
    %p31 = por %p29, %p30
    %p32 = scmp.ne.s32.totalorder %s24, %s27
    %p33 = scmp.eq.s32.totalorder %s14, 0
    %p34 = por %p32, %p33
    %p35 = scmp.ne.s32.totalorder %s24, %s27
    %p36 = scmp.eq.s32.totalorder %s19, 1
    %p37 = por %p35, %p36
    %p38 = scmp.ne.s32.totalorder %s27, %s28
    %p39 = scmp.eq.s32.totalorder %s19, 0
    %p40 = por %p38, %p39
    %p41 = scmp.ne.s32.totalorder %s27, %s28
    %p42 = scmp.eq.s32.totalorder %s20, 1
    %p43 = por %p41, %p42
    %p45 = scmp.ne.s32.totalorder %s28, %s44
    %p46 = scmp.eq.s32.totalorder %s20, 0
    %p47 = por %p45, %p46
    %s49 = sadd.s32 %s48, 1
    %p52 = scmp.eq.s32.totalorder %s14, 1
    %p53 = scmp.ne.s32.totalorder %s48, %s50
    %p54 = scmp.eq.s32.totalorder %s14, 0
    %p55 = por %p53, %p54
    %p56 = scmp.ne.s32.totalorder %s48, %s50
    %p57 = scmp.eq.s32.totalorder %s19, 1
    %p58 = por %p56, %p57
    %p59 = scmp.ne.s32.totalorder %s50, %s51
    %p60 = scmp.eq.s32.totalorder %s19, 0
    %p61 = por %p59, %p60
    %p62 = scmp.ne.s32.totalorder %s50, %s51
    %p63 = scmp.eq.s32.totalorder %s20, 1
    %p64 = por %p62, %p63
    %p66 = scmp.ne.s32.totalorder %s51, %s65
    %p67 = scmp.eq.s32.totalorder %s20, 0
    %p68 = por %p66, %p67
    %s70 = sadd.s32 %s69, 1
    %p73 = scmp.eq.s32.totalorder %s14, 1
    %p74 = scmp.ne.s32.totalorder %s69, %s71
    %p75 = scmp.eq.s32.totalorder %s14, 0
    %p76 = por %p74, %p75
    %p77 = scmp.ne.s32.totalorder %s69, %s71
    %p78 = scmp.eq.s32.totalorder %s19, 1
    %p79 = por %p77, %p78
    %p80 = scmp.ne.s32.totalorder %s71, %s72
    %p81 = scmp.eq.s32.totalorder %s19, 0
    %p82 = por %p80, %p81
    %p83 = scmp.ne.s32.totalorder %s71, %s72
    %p84 = scmp.eq.s32.totalorder %s20, 1
    %p85 = por %p83, %p84
    %p87 = scmp.ne.s32.totalorder %s72, %s86
    %p88 = scmp.eq.s32.totalorder %s20, 0
    %p89 = por %p87, %p88
    %s91 = sadd.s32 %s90, 1
    %p94 = scmp.eq.s32.totalorder %s14, 1
    %p95 = scmp.ne.s32.totalorder %s90, %s92
    %p96 = scmp.eq.s32.totalorder %s14, 0
    %p97 = por %p95, %p96
    %p98 = scmp.ne.s32.totalorder %s90, %s92
    %p99 = scmp.eq.s32.totalorder %s19, 1
    %p100 = por %p98, %p99
    %p101 = scmp.ne.s32.totalorder %s92, %s93
    %p102 = scmp.eq.s32.totalorder %s19, 0
    %p103 = por %p101, %p102
    %p104 = scmp.ne.s32.totalorder %s92, %s93
    %p105 = scmp.eq.s32.totalorder %s20, 1
    %p106 = por %p104, %p105
    %p108 = scmp.ne.s32.totalorder %s93, %s107
    %p109 = scmp.eq.s32.totalorder %s20, 0
    %p110 = por %p108, %p109
    %s112 = sadd.s32 %s111, 1
    %p115 = scmp.eq.s32.totalorder %s14, 1
    %p116 = scmp.ne.s32.totalorder %s111, %s113
    %p117 = scmp.eq.s32.totalorder %s14, 0
    %p118 = por %p116, %p117
    %p119 = scmp.ne.s32.totalorder %s111, %s113
    %p120 = scmp.eq.s32.totalorder %s19, 1
    %p121 = por %p119, %p120
    %p122 = scmp.ne.s32.totalorder %s113, %s114
    %p123 = scmp.eq.s32.totalorder %s19, 0
    %p124 = por %p122, %p123
    %p125 = scmp.ne.s32.totalorder %s113, %s114
    %p126 = scmp.eq.s32.totalorder %s20, 1
    %p127 = por %p125, %p126
    %p129 = scmp.ne.s32.totalorder %s114, %s128
    %p130 = scmp.eq.s32.totalorder %s20, 0
    %p131 = por %p129, %p130
    %s133 = sadd.s32 %s132, 1
    %p136 = scmp.eq.s32.totalorder %s14, 1
    %p137 = scmp.ne.s32.totalorder %s132, %s134
    %p138 = scmp.eq.s32.totalorder %s14, 0
    %p139 = por %p137, %p138
    %p140 = scmp.ne.s32.totalorder %s132, %s134
    %p141 = scmp.eq.s32.totalorder %s19, 1
    %p142 = por %p140, %p141
    %p143 = scmp.ne.s32.totalorder %s134, %s135
    %p144 = scmp.eq.s32.totalorder %s19, 0
    %p145 = por %p143, %p144
    %p146 = scmp.ne.s32.totalorder %s134, %s135
    %p147 = scmp.eq.s32.totalorder %s20, 1
    %p148 = por %p146, %p147
    %p150 = scmp.ne.s32.totalorder %s135, %s149
    %p151 = scmp.eq.s32.totalorder %s20, 0
    %p152 = por %p150, %p151
    %s154 = sadd.s32 %s153, 1
    %p157 = scmp.eq.s32.totalorder %s14, 1
    %p158 = scmp.ne.s32.totalorder %s153, %s155
    %p159 = scmp.eq.s32.totalorder %s14, 0
    %p160 = por %p158, %p159
    %p161 = scmp.ne.s32.totalorder %s153, %s155
    %p162 = scmp.eq.s32.totalorder %s19, 1
    %p163 = por %p161, %p162
    %p164 = scmp.ne.s32.totalorder %s155, %s156
    %p165 = scmp.eq.s32.totalorder %s19, 0
    %p166 = por %p164, %p165
    %p167 = scmp.ne.s32.totalorder %s155, %s156
    %p168 = scmp.eq.s32.totalorder %s20, 1
    %p169 = por %p167, %p168
    %p171 = scmp.ne.s32.totalorder %s156, %s170
    %p172 = scmp.eq.s32.totalorder %s20, 0
    %p173 = por %p171, %p172
    %s175 = sadd.s32 %s174, 1
    %p178 = scmp.eq.s32.totalorder %s14, 1
    %p179 = scmp.ne.s32.totalorder %s174, %s176
    %p180 = scmp.eq.s32.totalorder %s14, 0
    %p181 = por %p179, %p180
    %p182 = scmp.ne.s32.totalorder %s174, %s176
    %p183 = scmp.eq.s32.totalorder %s19, 1
    %p184 = por %p182, %p183
    %p185 = scmp.ne.s32.totalorder %s176, %s177
    %p186 = scmp.eq.s32.totalorder %s19, 0
    %p187 = por %p185, %p186
    %p188 = scmp.ne.s32.totalorder %s176, %s177
    %p189 = scmp.eq.s32.totalorder %s20, 1
    %p190 = por %p188, %p189
    %p192 = scmp.ne.s32.totalorder %s177, %s191
    %p193 = scmp.eq.s32.totalorder %s20, 0
    %p194 = por %p192, %p193
    %s195 = ssub.s32 %s14, %s21
    %p196 = scmp.eq.s32.totalorder %s195, 0
    %s198 = sadd.s32 %s197, 1
    %s199 = scalar_select %p196, %s197, %s198
    %p202 = pneg %p196
    %p203 = scmp.eq.s32.totalorder %s14, 1
    %p204 = por %p202, %p203
    %p205 = scmp.ne.s32.totalorder %s197, %s200
    %p206 = scmp.eq.s32.totalorder %s14, 0
    %p207 = por %p205, %p206
    %p208 = scmp.ne.s32.totalorder %s197, %s200
    %p209 = scmp.eq.s32.totalorder %s19, 1
    %p210 = por %p208, %p209
    %p211 = scmp.ne.s32.totalorder %s200, %s201
    %p212 = scmp.eq.s32.totalorder %s19, 0
    %p213 = por %p211, %p212
    %p214 = scmp.ne.s32.totalorder %s200, %s201
    %p215 = scmp.eq.s32.totalorder %s20, 1
    %p216 = por %p214, %p215
    %p218 = scmp.ne.s32.totalorder %s201, %s217
    %p219 = scmp.eq.s32.totalorder %s20, 0
    %p220 = por %p218, %p219
    %p221 = scmp.le.s32.totalorder 1, %s14
    %p222 = scmp.lt.s32.totalorder %s14, 3
    %p223 = pnand %p221, %p222
    %p224 = pneg %p223
    // Predicated region
    $region9: #{query_sa_block_pallas.2} parent=5 // pred_check
      _
    $region10: #{query_sa_block_pallas.2} parent=5 // pred_check_branch
      %226 = sbr.rel (%p223) target = $region12
    $region11: #{query_sa_block_pallas.2} parent=5 // pred_region
      %s227 = ssub.s32 %s14, 1
      // Predicated region
      $region13: #{query_sa_block_pallas.2} parent=11 // pred_check
        %p228 = pneg %p61
      $region14: #{query_sa_block_pallas.2} parent=11 // pred_check_branch
        %230 = sbr.rel (%p228) target = $region16
      $region15: #{query_sa_block_pallas.2} parent=11 // pred_region
        _
      $region16: #{query_sa_block_pallas.2} parent=11 // pred_fallthru
        _
      // Predicated region
      $region17: #{query_sa_block_pallas.2} parent=11 // pred_check
        %p231 = pneg %p82
      $region18: #{query_sa_block_pallas.2} parent=11 // pred_check_branch
        %233 = sbr.rel (%p231) target = $region20
      $region19: #{query_sa_block_pallas.2} parent=11 // pred_region
        _
      $region20: #{query_sa_block_pallas.2} parent=11 // pred_fallthru
        _
      // Predicated region
      $region21: #{query_sa_block_pallas.2} parent=11 // pred_check
        %p234 = pneg %p103
      $region22: #{query_sa_block_pallas.2} parent=11 // pred_check_branch
        %236 = sbr.rel (%p234) target = $region24
      $region23: #{query_sa_block_pallas.2} parent=11 // pred_region
        _
      $region24: #{query_sa_block_pallas.2} parent=11 // pred_fallthru
        _
      // Predicated region
      $region25: #{query_sa_block_pallas.2} parent=11 // pred_check
        %p237 = pneg %p124
      $region26: #{query_sa_block_pallas.2} parent=11 // pred_check_branch
        %239 = sbr.rel (%p237) target = $region28
      $region27: #{query_sa_block_pallas.2} parent=11 // pred_region
        _
      $region28: #{query_sa_block_pallas.2} parent=11 // pred_fallthru
        _
      // Predicated region
      $region29: #{query_sa_block_pallas.2} parent=11 // pred_check
        %p240 = pneg %p145
      $region30: #{query_sa_block_pallas.2} parent=11 // pred_check_branch
        %242 = sbr.rel (%p240) target = $region32
      $region31: #{query_sa_block_pallas.2} parent=11 // pred_region
        _
      $region32: #{query_sa_block_pallas.2} parent=11 // pred_fallthru
        _
      // Predicated region
      $region33: #{query_sa_block_pallas.2} parent=11 // pred_check
        %p243 = pneg %p166
      $region34: #{query_sa_block_pallas.2} parent=11 // pred_check_branch
        %245 = sbr.rel (%p243) target = $region36
      $region35: #{query_sa_block_pallas.2} parent=11 // pred_region
        _
      $region36: #{query_sa_block_pallas.2} parent=11 // pred_fallthru
        _
      // Predicated region
      $region37: #{query_sa_block_pallas.2} parent=11 // pred_check
        %p246 = pneg %p187
      $region38: #{query_sa_block_pallas.2} parent=11 // pred_check_branch
        %248 = sbr.rel (%p246) target = $region40
      $region39: #{query_sa_block_pallas.2} parent=11 // pred_region
        _
      $region40: #{query_sa_block_pallas.2} parent=11 // pred_fallthru
        _
    $region12: #{query_sa_block_pallas.2} parent=5 // pred_fallthru
      _
    %p249 = scmp.lt.s32.totalorder %s14, 2
    // Predicated region
    $region41: #{query_sa_block_pallas.2} parent=5 // pred_check
      %p250 = pneg %p249
    $region42: #{query_sa_block_pallas.2} parent=5 // pred_check_branch
      %252 = sbr.rel (%p250) target = $region44
    $region43: #{query_sa_block_pallas.2} parent=5 // pred_region
      // Predicated region
      $region45: #{query_sa_block_pallas.2} parent=43 // pred_check
        %p253 = pneg %p34
      $region46: #{query_sa_block_pallas.2} parent=43 // pred_check_branch
        %255 = sbr.rel (%p253) target = $region48
      $region47: #{query_sa_block_pallas.2} parent=43 // pred_region
        %p256 = scmp.lt.s32.totalorder %s14, 1
        %s257 = scalar_select %p256, %s14, 1
        %s258 = smul.addr %s257, 8
        %s259 = smul.addr %s258, 8
        %s260 = scalar_lea.vmem %s0, %s259
      $region48: #{query_sa_block_pallas.2} parent=43 // pred_fallthru
        _
    $region44: #{query_sa_block_pallas.2} parent=5 // pred_fallthru
      _
    %p261 = scmp.le.s32.totalorder 1, %s14
    %p262 = scmp.lt.s32.totalorder %s14, 3
    %p263 = pnand %p261, %p262
    %p264 = pneg %p263
    // Predicated region
    $region49: #{query_sa_block_pallas.2} parent=5 // pred_check
      _
    $region50: #{query_sa_block_pallas.2} parent=5 // pred_check_branch
      %266 = sbr.rel (%p263) target = $region52
    $region51: #{query_sa_block_pallas.2} parent=5 // pred_region
      %s267 = ssub.s32 %s14, 1
      %p268 = scmp.lt.s32.totalorder %s19, 1
      %s269 = scalar_select %p268, %s19, 1
      %s270 = smul.addr %s269, 8
      %s271 = smul.addr %s270, 8
      %s272 = scalar_lea.vmem %s0, %s271
      %p273 = pneg %p40
      %p274 = pneg %p37
      %p275 = pneg %p61
      %p276 = pneg %p58
      %p277 = pneg %p82
      %p278 = pneg %p79
      %p279 = pneg %p103
      %p280 = pneg %p100
      %p281 = pneg %p124
      %p282 = pneg %p121
      %p283 = pneg %p145
      %p284 = pneg %p142
      %p285 = pneg %p166
      %p286 = pneg %p163
      %p287 = pneg %p187
      %p288 = pneg %p184
      %p289 = pneg %p213
      %p290 = pneg %p210
      %p291 = scmp.lt.s32.totalorder %s19, 1
      %s292 = scalar_select %p291, %s19, 1
      %s293 = smul.addr %s292, 2
      %s294 = smul.addr %s293, 8
      %s295 = scalar_lea.vmem %s8, %s294
      %p296 = scmp.lt.s32.totalorder %s19, 1
      %s297 = scalar_select %p296, %s19, 1
      %s298 = smul.addr %s297, 8
      %s299 = smul.addr %s298, 8
      %s300 = scalar_lea.vmem %s0, %s299
      %p301 = scmp.lt.s32.totalorder %s19, 1
      %s302 = scalar_select %p301, %s19, 1
      %s303 = smul.addr %s302, 2
      %s304 = smul.addr %s303, 8
      %s305 = scalar_lea.vmem %s8, %s304
      %v306 = vld [vmem:[%s300] sm:$0xff]
      %v307 = vld [vmem:[%s300 + $0x8] sm:$0xff]
      %v308 = vld [vmem:[%s300 + $0x10] sm:$0xff]
      %v309 = vld [vmem:[%s300 + $0x18] sm:$0xff]
      %v310 = vld [vmem:[%s300 + $0x20] sm:$0xff]
      %v311 = vld [vmem:[%s300 + $0x28] sm:$0xff]
      %v312 = vld [vmem:[%s300 + $0x30] sm:$0xff]
      %v313 = vld [vmem:[%s300 + $0x38] sm:$0xff]
      %314 = vst [vmem:[#allocation2] sm:$0xff] 0.0
      %315 = vst [vmem:[#allocation2 + $0x8] sm:$0x3] 0.0
      %316 = vst [vmem:[#allocation2 + $0x10] sm:$0xff] 0.0
      %317 = vst [vmem:[#allocation2 + $0x18] sm:$0x3] 0.0
      %318 = vst [vmem:[#allocation2 + $0x20] sm:$0xff] 0.0
      %319 = vst [vmem:[#allocation2 + $0x28] sm:$0x3] 0.0
      %320 = vst [vmem:[#allocation2 + $0x30] sm:$0xff] 0.0
      %321 = vst [vmem:[#allocation2 + $0x38] sm:$0x3] 0.0
      %322 = vst [vmem:[#allocation2 + $0x40] sm:$0xff] 0.0
      %323 = vst [vmem:[#allocation2 + $0x48] sm:$0x3] 0.0
      %324 = vst [vmem:[#allocation2 + $0x50] sm:$0xff] 0.0
      %325 = vst [vmem:[#allocation2 + $0x58] sm:$0x3] 0.0
      %326 = vst [vmem:[#allocation2 + $0x60] sm:$0xff] 0.0
      %327 = vst [vmem:[#allocation2 + $0x68] sm:$0x3] 0.0
      %328 = vst [vmem:[#allocation2 + $0x70] sm:$0xff] 0.0
      %329 = vst [vmem:[#allocation2 + $0x78] sm:$0x3] 0.0
      %330 = vst [vmem:[#allocation2 + $0x80] sm:$0xff] 0.0
      %331 = vst [vmem:[#allocation2 + $0x88] sm:$0x3] 0.0
      %332 = vst [vmem:[#allocation2 + $0x90] sm:$0xff] 0.0
      %333 = vst [vmem:[#allocation2 + $0x98] sm:$0x3] 0.0
      %s334 = scalar_lea.vmem [#allocation2], 16
      %335 = vst [vmem:[%s334 + $0x1] sm:$0xff] %v306
      %336 = vst [vmem:[%s334 + $0x11] sm:$0xff] %v307
      %337 = vst [vmem:[%s334 + $0x21] sm:$0xff] %v308
      %338 = vst [vmem:[%s334 + $0x31] sm:$0xff] %v309
      %339 = vst [vmem:[%s334 + $0x41] sm:$0xff] %v310
      %340 = vst [vmem:[%s334 + $0x51] sm:$0xff] %v311
      %341 = vst [vmem:[%s334 + $0x61] sm:$0xff] %v312
      %342 = vst [vmem:[%s334 + $0x71] sm:$0xff] %v313
      %v343 = vld [vmem:[#allocation2] sm:$0xff]
      %v344 = vld [vmem:[#allocation2 + $0x10] sm:$0xff]
      %v345 = vld [vmem:[#allocation2 + $0x20] sm:$0xff]
      %v346 = vld [vmem:[#allocation2 + $0x30] sm:$0xff]
      %v347 = vld [vmem:[#allocation2 + $0x40] sm:$0xff]
      %v348 = vld [vmem:[#allocation2 + $0x50] sm:$0xff]
      %v349 = vld [vmem:[#allocation2 + $0x60] sm:$0xff]
      %v350 = vld [vmem:[#allocation2 + $0x70] sm:$0xff]
      %v351 = vld [vmem:[#allocation2 + $0x80] sm:$0xff]
      %v352 = vld [vmem:[#allocation2 + $0x90] sm:$0xff]
      %v353 = vld [vmem:[#allocation2 + $0x1] sm:$0xff]
      %v354 = vld [vmem:[#allocation2 + $0x11] sm:$0xff]
      %v355 = vld [vmem:[#allocation2 + $0x21] sm:$0xff]
      %v356 = vld [vmem:[#allocation2 + $0x31] sm:$0xff]
      %v357 = vld [vmem:[#allocation2 + $0x41] sm:$0xff]
      %v358 = vld [vmem:[#allocation2 + $0x51] sm:$0xff]
      %v359 = vld [vmem:[#allocation2 + $0x61] sm:$0xff]
      %v360 = vld [vmem:[#allocation2 + $0x71] sm:$0xff]
      %v361 = vld [vmem:[#allocation2 + $0x81] sm:$0xff]
      %v362 = vld [vmem:[#allocation2 + $0x91] sm:$0xff]
      %v363 = vld [vmem:[#allocation2 + $0x2] sm:$0xff]
      %v364 = vld [vmem:[#allocation2 + $0x12] sm:$0xff]
      %v365 = vld [vmem:[#allocation2 + $0x22] sm:$0xff]
      %v366 = vld [vmem:[#allocation2 + $0x32] sm:$0xff]
      %v367 = vld [vmem:[#allocation2 + $0x42] sm:$0xff]
      %v368 = vld [vmem:[#allocation2 + $0x52] sm:$0xff]
      %v369 = vld [vmem:[#allocation2 + $0x62] sm:$0xff]
      %v370 = vld [vmem:[#allocation2 + $0x72] sm:$0xff]
      %v371 = vld [vmem:[#allocation2 + $0x82] sm:$0xff]
      %v372 = vld [vmem:[#allocation2 + $0x92] sm:$0xff]
      %v373 = vld [vmem:[%s1] sm:$0xff]
      %v374 = vld [vmem:[%s1 + $0x8] sm:$0x1]
      %v375 = vlaneseq
      %v376 = vshrl.u32 %v375, 7
      %v377 = vsub.s32 0, %v376
      %v378 = vrot.slane %v373, %v377
      %v379 = vmul.f32 %v343, %v378
      %v380 = vmul.f32 %v344, %v378
      %v381 = vmul.f32 %v345, %v378
      %v382 = vmul.f32 %v346, %v378
      %v383 = vmul.f32 %v347, %v378
      %v384 = vmul.f32 %v348, %v378
      %v385 = vmul.f32 %v349, %v378
      %v386 = vmul.f32 %v350, %v378
      %v387 = vadd.f32 %v379, 0.0
      %v388 = vadd.f32 %v380, 0.0
      %v389 = vadd.f32 %v381, 0.0
      %v390 = vadd.f32 %v382, 0.0
      %v391 = vadd.f32 %v383, 0.0
      %v392 = vadd.f32 %v384, 0.0
      %v393 = vadd.f32 %v385, 0.0
      %v394 = vadd.f32 %v386, 0.0
      %v395 = vlaneseq
      %v396 = vshrl.u32 %v395, 7
      %v397 = vsub.s32 1, %v396
      %v398 = vrot.slane %v373, %v397
      %v399 = vmul.f32 %v353, %v398
      %v400 = vmul.f32 %v354, %v398
      %v401 = vmul.f32 %v355, %v398
      %v402 = vmul.f32 %v356, %v398
      %v403 = vmul.f32 %v357, %v398
      %v404 = vmul.f32 %v358, %v398
      %v405 = vmul.f32 %v359, %v398
      %v406 = vmul.f32 %v360, %v398
      %v407 = vadd.f32 %v387, %v399
      %v408 = vadd.f32 %v388, %v400
      %v409 = vadd.f32 %v389, %v401
      %v410 = vadd.f32 %v390, %v402
      %v411 = vadd.f32 %v391, %v403
      %v412 = vadd.f32 %v392, %v404
      %v413 = vadd.f32 %v393, %v405
      %v414 = vadd.f32 %v394, %v406
      %v415 = vlaneseq
      %v416 = vshrl.u32 %v415, 7
      %v417 = vsub.s32 2, %v416
      %v418 = vrot.slane %v373, %v417
      %v419 = vmul.f32 %v363, %v418
      %v420 = vmul.f32 %v364, %v418
      %v421 = vmul.f32 %v365, %v418
      %v422 = vmul.f32 %v366, %v418
      %v423 = vmul.f32 %v367, %v418
      %v424 = vmul.f32 %v368, %v418
      %v425 = vmul.f32 %v369, %v418
      %v426 = vmul.f32 %v370, %v418
      %v427 = vadd.f32 %v407, %v419
      %v428 = vadd.f32 %v408, %v420
      %v429 = vadd.f32 %v409, %v421
      %v430 = vadd.f32 %v410, %v422
      %v431 = vadd.f32 %v411, %v423
      %v432 = vadd.f32 %v412, %v424
      %v433 = vadd.f32 %v413, %v425
      %v434 = vadd.f32 %v414, %v426
      %v435 = vlaneseq
      %v436 = vshrl.u32 %v435, 7
      %v437 = vsub.s32 3, %v436
      %v438 = vrot.slane %v373, %v437
      %v439 = vmul.f32 %v344, %v438
      %v440 = vmul.f32 %v345, %v438
      %v441 = vmul.f32 %v346, %v438
      %v442 = vmul.f32 %v347, %v438
      %v443 = vmul.f32 %v348, %v438
      %v444 = vmul.f32 %v349, %v438
      %v445 = vmul.f32 %v350, %v438
      %v446 = vmul.f32 %v351, %v438
      %v447 = vadd.f32 %v427, %v439
      %v448 = vadd.f32 %v428, %v440
      %v449 = vadd.f32 %v429, %v441
      %v450 = vadd.f32 %v430, %v442
      %v451 = vadd.f32 %v431, %v443
      %v452 = vadd.f32 %v432, %v444
      %v453 = vadd.f32 %v433, %v445
      %v454 = vadd.f32 %v434, %v446
      %v455 = vlaneseq
      %v456 = vshrl.u32 %v455, 7
      %v457 = vsub.s32 4, %v456
      %v458 = vrot.slane %v373, %v457
      %v459 = vmul.f32 %v354, %v458
      %v460 = vmul.f32 %v355, %v458
      %v461 = vmul.f32 %v356, %v458
      %v462 = vmul.f32 %v357, %v458
      %v463 = vmul.f32 %v358, %v458
      %v464 = vmul.f32 %v359, %v458
      %v465 = vmul.f32 %v360, %v458
      %v466 = vmul.f32 %v361, %v458
      %v467 = vadd.f32 %v447, %v459
      %v468 = vadd.f32 %v448, %v460
      %v469 = vadd.f32 %v449, %v461
      %v470 = vadd.f32 %v450, %v462
      %v471 = vadd.f32 %v451, %v463
      %v472 = vadd.f32 %v452, %v464
      %v473 = vadd.f32 %v453, %v465
      %v474 = vadd.f32 %v454, %v466
      %v475 = vlaneseq
      %v476 = vshrl.u32 %v475, 7
      %v477 = vsub.s32 5, %v476
      %v478 = vrot.slane %v373, %v477
      %v479 = vmul.f32 %v364, %v478
      %v480 = vmul.f32 %v365, %v478
      %v481 = vmul.f32 %v366, %v478
      %v482 = vmul.f32 %v367, %v478
      %v483 = vmul.f32 %v368, %v478
      %v484 = vmul.f32 %v369, %v478
      %v485 = vmul.f32 %v370, %v478
      %v486 = vmul.f32 %v371, %v478
      %v487 = vadd.f32 %v467, %v479
      %v488 = vadd.f32 %v468, %v480
      %v489 = vadd.f32 %v469, %v481
      %v490 = vadd.f32 %v470, %v482
      %v491 = vadd.f32 %v471, %v483
      %v492 = vadd.f32 %v472, %v484
      %v493 = vadd.f32 %v473, %v485
      %v494 = vadd.f32 %v474, %v486
      %v495 = vlaneseq
      %v496 = vshrl.u32 %v495, 7
      %v497 = vsub.s32 6, %v496
      %v498 = vrot.slane %v373, %v497
      %v499 = vmul.f32 %v345, %v498
      %v500 = vmul.f32 %v346, %v498
      %v501 = vmul.f32 %v347, %v498
      %v502 = vmul.f32 %v348, %v498
      %v503 = vmul.f32 %v349, %v498
      %v504 = vmul.f32 %v350, %v498
      %v505 = vmul.f32 %v351, %v498
      %v506 = vmul.f32 %v352, %v498
      %v507 = vadd.f32 %v487, %v499
      %v508 = vadd.f32 %v488, %v500
      %v509 = vadd.f32 %v489, %v501
      %v510 = vadd.f32 %v490, %v502
      %v511 = vadd.f32 %v491, %v503
      %v512 = vadd.f32 %v492, %v504
      %v513 = vadd.f32 %v493, %v505
      %v514 = vadd.f32 %v494, %v506
      %v515 = vlaneseq
      %v516 = vshrl.u32 %v515, 7
      %v517 = vsub.s32 7, %v516
      %v518 = vrot.slane %v373, %v517
      %v519 = vmul.f32 %v355, %v518
      %v520 = vmul.f32 %v356, %v518
      %v521 = vmul.f32 %v357, %v518
      %v522 = vmul.f32 %v358, %v518
      %v523 = vmul.f32 %v359, %v518
      %v524 = vmul.f32 %v360, %v518
      %v525 = vmul.f32 %v361, %v518
      %v526 = vmul.f32 %v362, %v518
      %v527 = vadd.f32 %v507, %v519
      %v528 = vadd.f32 %v508, %v520
      %v529 = vadd.f32 %v509, %v521
      %v530 = vadd.f32 %v510, %v522
      %v531 = vadd.f32 %v511, %v523
      %v532 = vadd.f32 %v512, %v524
      %v533 = vadd.f32 %v513, %v525
      %v534 = vadd.f32 %v514, %v526
      %v535 = vlaneseq
      %v536 = vshrl.u32 %v535, 7
      %v537 = vsub.s32 0, %v536
      %v538 = vrot.slane %v374, %v537
      %v539 = vmul.f32 %v365, %v538
      %v540 = vmul.f32 %v366, %v538
      %v541 = vmul.f32 %v367, %v538
      %v542 = vmul.f32 %v368, %v538
      %v543 = vmul.f32 %v369, %v538
      %v544 = vmul.f32 %v370, %v538
      %v545 = vmul.f32 %v371, %v538
      %v546 = vmul.f32 %v372, %v538
      %v547 = vadd.f32 %v527, %v539
      %v548 = vadd.f32 %v528, %v540
      %v549 = vadd.f32 %v529, %v541
      %v550 = vadd.f32 %v530, %v542
      %v551 = vadd.f32 %v531, %v543
      %v552 = vadd.f32 %v532, %v544
      %v553 = vadd.f32 %v533, %v545
      %v554 = vadd.f32 %v534, %v546
      %v555 = vadd.f32 %v306, %v547
      %v556 = vadd.f32 %v307, %v548
      %v557 = vadd.f32 %v308, %v549
      %v558 = vadd.f32 %v309, %v550
      %v559 = vadd.f32 %v310, %v551
      %v560 = vadd.f32 %v311, %v552
      %v561 = vadd.f32 %v312, %v553
      %v562 = vadd.f32 %v313, %v554
      %v563 = vld [vmem:[%s2] sm:$0x1]
      %v565 = vlaneseq
      %v566 = vshrl.u32 %v565, 7
      %v567 = vsub.s32 0, %v566
      %v568 = vrot.slane %v563, %v567
      %v570 = vadd.f32 %v555, %v568
      %v571 = vadd.f32 %v556, %v568
      %v572 = vadd.f32 %v557, %v568
      %v573 = vadd.f32 %v558, %v568
      %v574 = vadd.f32 %v559, %v568
      %v575 = vadd.f32 %v560, %v568
      %v576 = vadd.f32 %v561, %v568
      %v577 = vadd.f32 %v562, %v568
      %v578 = vld [vmem:[%s3] sm:$0x1]
      %v579 = vld [vmem:[%s4] sm:$0x1]
      %580 = vadd.xlane.f32.xlu0 %v570
      %v581 = vpop.xlane.xlu0 %580
      %582 = vadd.xlane.f32.xlu0 %v571
      %v583 = vpop.xlane.xlu0 %582
      %584 = vadd.xlane.f32.xlu0 %v572
      %v585 = vpop.xlane.xlu0 %584
      %586 = vadd.xlane.f32.xlu0 %v573
      %v587 = vpop.xlane.xlu0 %586
      %588 = vadd.xlane.f32.xlu0 %v574
      %v589 = vpop.xlane.xlu0 %588
      %590 = vadd.xlane.f32.xlu0 %v575
      %v591 = vpop.xlane.xlu0 %590
      %592 = vadd.xlane.f32.xlu0 %v576
      %v593 = vpop.xlane.xlu0 %592
      %594 = vadd.xlane.f32.xlu0 %v577
      %v595 = vpop.xlane.xlu0 %594
      %v596 = vrcp.pop 128.0
      %v597 = vmul.f32 %v581, %v596
      %v598 = vmul.f32 %v583, %v596
      %v599 = vmul.f32 %v585, %v596
      %v600 = vmul.f32 %v587, %v596
      %v601 = vmul.f32 %v589, %v596
      %v602 = vmul.f32 %v591, %v596
      %v603 = vmul.f32 %v593, %v596
      %v604 = vmul.f32 %v595, %v596
      %v605 = vsub.f32 %v570, %v597
      %v606 = vsub.f32 %v571, %v598
      %v607 = vsub.f32 %v572, %v599
      %v608 = vsub.f32 %v573, %v600
      %v609 = vsub.f32 %v574, %v601
      %v610 = vsub.f32 %v575, %v602
      %v611 = vsub.f32 %v576, %v603
      %v612 = vsub.f32 %v577, %v604
      %v613 = vmul.f32 %v605, %v605
      %v614 = vmul.f32 %v606, %v606
      %v615 = vmul.f32 %v607, %v607
      %v616 = vmul.f32 %v608, %v608
      %v617 = vmul.f32 %v609, %v609
      %v618 = vmul.f32 %v610, %v610
      %v619 = vmul.f32 %v611, %v611
      %v620 = vmul.f32 %v612, %v612
      %621 = vadd.xlane.f32.xlu0 %v613
      %v622 = vpop.xlane.xlu0 %621
      %623 = vadd.xlane.f32.xlu0 %v614
      %v624 = vpop.xlane.xlu0 %623
      %625 = vadd.xlane.f32.xlu0 %v615
      %v626 = vpop.xlane.xlu0 %625
      %627 = vadd.xlane.f32.xlu0 %v616
      %v628 = vpop.xlane.xlu0 %627
      %629 = vadd.xlane.f32.xlu0 %v617
      %v630 = vpop.xlane.xlu0 %629
      %631 = vadd.xlane.f32.xlu0 %v618
      %v632 = vpop.xlane.xlu0 %631
      %633 = vadd.xlane.f32.xlu0 %v619
      %v634 = vpop.xlane.xlu0 %633
      %635 = vadd.xlane.f32.xlu0 %v620
      %v636 = vpop.xlane.xlu0 %635
      %v637 = vmul.f32 %v622, %v596
      %v638 = vmul.f32 %v624, %v596
      %v639 = vmul.f32 %v626, %v596
      %v640 = vmul.f32 %v628, %v596
      %v641 = vmul.f32 %v630, %v596
      %v642 = vmul.f32 %v632, %v596
      %v643 = vmul.f32 %v634, %v596
      %v644 = vmul.f32 %v636, %v596
      %v645 = vadd.f32 %v637, 1e-05
      %v646 = vadd.f32 %v638, 1e-05
      %v647 = vadd.f32 %v639, 1e-05
      %v648 = vadd.f32 %v640, 1e-05
      %v649 = vadd.f32 %v641, 1e-05
      %v650 = vadd.f32 %v642, 1e-05
      %v651 = vadd.f32 %v643, 1e-05
      %v652 = vadd.f32 %v644, 1e-05
      %v653 = vrsqrt.pop %v645
      %v654 = vrsqrt.pop %v646
      %v655 = vrsqrt.pop %v647
      %v656 = vrsqrt.pop %v648
      %v657 = vrsqrt.pop %v649
      %v658 = vrsqrt.pop %v650
      %v659 = vrsqrt.pop %v651
      %v660 = vrsqrt.pop %v652
      %v661 = vmul.f32 %v605, %v653
      %v662 = vmul.f32 %v606, %v654
      %v663 = vmul.f32 %v607, %v655
      %v664 = vmul.f32 %v608, %v656
      %v665 = vmul.f32 %v609, %v657
      %v666 = vmul.f32 %v610, %v658
      %v667 = vmul.f32 %v611, %v659
      %v668 = vmul.f32 %v612, %v660
      %v670 = vlaneseq
      %v671 = vshrl.u32 %v670, 7
      %v672 = vsub.s32 0, %v671
      %v673 = vrot.slane %v578, %v672
      %v675 = vmul.f32 %v661, %v673
      %v676 = vmul.f32 %v662, %v673
      %v677 = vmul.f32 %v663, %v673
      %v678 = vmul.f32 %v664, %v673
      %v679 = vmul.f32 %v665, %v673
      %v680 = vmul.f32 %v666, %v673
      %v681 = vmul.f32 %v667, %v673
      %v682 = vmul.f32 %v668, %v673
      %v684 = vlaneseq
      %v685 = vshrl.u32 %v684, 7
      %v686 = vsub.s32 0, %v685
      %v687 = vrot.slane %v579, %v686
      %v689 = vadd.f32 %v675, %v687
      %v690 = vadd.f32 %v676, %v687
      %v691 = vadd.f32 %v677, %v687
      %v692 = vadd.f32 %v678, %v687
      %v693 = vadd.f32 %v679, %v687
      %v694 = vadd.f32 %v680, %v687
      %v695 = vadd.f32 %v681, %v687
      %v696 = vadd.f32 %v682, %v687
      %v697 = vld [vmem:[%s6] sm:$0xff]
      %v698 = vld [vmem:[%s6 + $0x8] sm:$0xff]
      %v699 = vld [vmem:[%s6 + $0x10] sm:$0xff]
      %v700 = vld [vmem:[%s6 + $0x18] sm:$0xff]
      %v701 = vld [vmem:[%s6 + $0x20] sm:$0xff]
      %v702 = vld [vmem:[%s6 + $0x28] sm:$0xff]
      %v703 = vld [vmem:[%s6 + $0x30] sm:$0xff]
      %v704 = vld [vmem:[%s6 + $0x38] sm:$0xff]
      %v705 = vld [vmem:[%s6 + $0x40] sm:$0xff]
      %v706 = vld [vmem:[%s6 + $0x48] sm:$0xff]
      %v707 = vld [vmem:[%s6 + $0x50] sm:$0xff]
      %v708 = vld [vmem:[%s6 + $0x58] sm:$0xff]
      %v709 = vld [vmem:[%s6 + $0x60] sm:$0xff]
      %v710 = vld [vmem:[%s6 + $0x68] sm:$0xff]
      %v711 = vld [vmem:[%s6 + $0x70] sm:$0xff]
      %v712 = vld [vmem:[%s6 + $0x78] sm:$0xff]
      %v713 = vld [vmem:[%s6 + $0x80] sm:$0xff]
      %v714 = vld [vmem:[%s6 + $0x88] sm:$0xff]
      %v715 = vld [vmem:[%s6 + $0x90] sm:$0xff]
      %v716 = vld [vmem:[%s6 + $0x98] sm:$0xff]
      %v717 = vld [vmem:[%s6 + $0xa0] sm:$0xff]
      %v718 = vld [vmem:[%s6 + $0xa8] sm:$0xff]
      %v719 = vld [vmem:[%s6 + $0xb0] sm:$0xff]
      %v720 = vld [vmem:[%s6 + $0xb8] sm:$0xff]
      %v721 = vld [vmem:[%s6 + $0xc0] sm:$0xff]
      %v722 = vld [vmem:[%s6 + $0xc8] sm:$0xff]
      %v723 = vld [vmem:[%s6 + $0xd0] sm:$0xff]
      %v724 = vld [vmem:[%s6 + $0xd8] sm:$0xff]
      %v725 = vld [vmem:[%s6 + $0xe0] sm:$0xff]
      %v726 = vld [vmem:[%s6 + $0xe8] sm:$0xff]
      %v727 = vld [vmem:[%s6 + $0xf0] sm:$0xff]
      %v728 = vld [vmem:[%s6 + $0xf8] sm:$0xff]
      %729 = vmatprep.subr.mxu0 %v698
      %730 = vmatpush1.msra.mxu0 %v697
      %731 = vmatprep.subr.mxu0 %v700
      %732 = vmatpush1.msra.mxu0 %v699
      %733 = vmatprep.subr.mxu0 %v702
      %734 = vmatpush1.msra.mxu0 %v701
      %735 = vmatprep.subr.mxu0 %v704
      %736 = vmatpush1.msra.mxu0 %v703
      %737 = vmatprep.subr.mxu0 %v706
      %738 = vmatpush1.msra.mxu0 %v705
      %739 = vmatprep.subr.mxu0 %v708
      %740 = vmatpush1.msra.mxu0 %v707
      %741 = vmatprep.subr.mxu0 %v710
      %742 = vmatpush1.msra.mxu0 %v709
      %743 = vmatprep.subr.mxu0 %v712
      %744 = vmatpush1.msra.mxu0 %v711
      %745 = vmatprep.subr.mxu0 %v714
      %746 = vmatpush1.msra.mxu0 %v713
      %747 = vmatprep.subr.mxu0 %v716
      %748 = vmatpush1.msra.mxu0 %v715
      %749 = vmatprep.subr.mxu0 %v718
      %750 = vmatpush1.msra.mxu0 %v717
      %751 = vmatprep.subr.mxu0 %v720
      %752 = vmatpush1.msra.mxu0 %v719
      %753 = vmatprep.subr.mxu0 %v722
      %754 = vmatpush1.msra.mxu0 %v721
      %755 = vmatprep.subr.mxu0 %v724
      %756 = vmatpush1.msra.mxu0 %v723
      %757 = vmatprep.subr.mxu0 %v726
      %758 = vmatpush1.msra.mxu0 %v725
      %759 = vmatprep.subr.mxu0 %v728
      %760 = vmatpush1.msra.mxu0 %v727
      %761 = vmatprep.subr.mxu0 0.0
      %762 = vmatpush1.msra.mxu0 0.0
      %763 = vmatprep.subr.mxu0 0.0
      %764 = vmatpush1.msra.mxu0 0.0
      %765 = vmatprep.subr.mxu0 0.0
      %766 = vmatpush1.msra.mxu0 0.0
      %767 = vmatprep.subr.mxu0 0.0
      %768 = vmatpush1.msra.mxu0 0.0
      %769 = vmatprep.subr.mxu0 0.0
      %770 = vmatpush1.msra.mxu0 0.0
      %771 = vmatprep.subr.mxu0 0.0
      %772 = vmatpush1.msra.mxu0 0.0
      %773 = vmatprep.subr.mxu0 0.0
      %774 = vmatpush1.msra.mxu0 0.0
      %775 = vmatprep.subr.mxu0 0.0
      %776 = vmatpush1.msra.mxu0 0.0
      %777 = vmatprep.subr.mxu0 0.0
      %778 = vmatpush1.msra.mxu0 0.0
      %779 = vmatprep.subr.mxu0 0.0
      %780 = vmatpush1.msra.mxu0 0.0
      %781 = vmatprep.subr.mxu0 0.0
      %782 = vmatpush1.msra.mxu0 0.0
      %783 = vmatprep.subr.mxu0 0.0
      %784 = vmatpush1.msra.mxu0 0.0
      %785 = vmatprep.subr.mxu0 0.0
      %786 = vmatpush1.msra.mxu0 0.0
      %787 = vmatprep.subr.mxu0 0.0
      %788 = vmatpush1.msra.mxu0 0.0
      %789 = vmatprep.subr.mxu0 0.0
      %790 = vmatpush1.msra.mxu0 0.0
      %791 = vmatprep.subr.mxu0 0.0
      %792 = vmatpush1.msra.mxu0 0.0
      %793 = vmatprep.mubr.f32.mxu0 0.0
      %794 = vmatmul.mubr.f32.gmra.mrb[0].mxu0 %v689
      %v795 = vpop.f32.mrb[0].mxu0
      %v796 = vadd.f32 0.0, %v795
      %v797 = vpop.f32.mrb[0].mxu0
      %v798 = vadd.f32 0.0, %v797
      %799 = vmatprep.mubr.f32.mxu0 0.0
      %800 = vmatmul.mubr.f32.gmra.mrb[0].mxu0 %v690
      %v801 = vpop.f32.mrb[0].mxu0
      %v802 = vadd.f32 0.0, %v801
      %v803 = vpop.f32.mrb[0].mxu0
      %v804 = vadd.f32 0.0, %v803
      %805 = vmatprep.mubr.f32.mxu0 0.0
      %806 = vmatmul.mubr.f32.gmra.mrb[0].mxu0 %v691
      %v807 = vpop.f32.mrb[0].mxu0
      %v808 = vadd.f32 0.0, %v807
      %v809 = vpop.f32.mrb[0].mxu0
      %v810 = vadd.f32 0.0, %v809
      %811 = vmatprep.mubr.f32.mxu0 0.0
      %812 = vmatmul.mubr.f32.gmra.mrb[0].mxu0 %v692
      %v813 = vpop.f32.mrb[0].mxu0
      %v814 = vadd.f32 0.0, %v813
      %v815 = vpop.f32.mrb[0].mxu0
      %v816 = vadd.f32 0.0, %v815
      %817 = vmatprep.mubr.f32.mxu0 0.0
      %818 = vmatmul.mubr.f32.gmra.mrb[0].mxu0 %v693
      %v819 = vpop.f32.mrb[0].mxu0
      %v820 = vadd.f32 0.0, %v819
      %v821 = vpop.f32.mrb[0].mxu0
      %v822 = vadd.f32 0.0, %v821
      %823 = vmatprep.mubr.f32.mxu0 0.0
      %824 = vmatmul.mubr.f32.gmra.mrb[0].mxu0 %v694
      %v825 = vpop.f32.mrb[0].mxu0
      %v826 = vadd.f32 0.0, %v825
      %v827 = vpop.f32.mrb[0].mxu0
      %v828 = vadd.f32 0.0, %v827
      %829 = vmatprep.mubr.f32.mxu0 0.0
      %830 = vmatmul.mubr.f32.gmra.mrb[0].mxu0 %v695
      %v831 = vpop.f32.mrb[0].mxu0
      %v832 = vadd.f32 0.0, %v831
      %v833 = vpop.f32.mrb[0].mxu0
      %v834 = vadd.f32 0.0, %v833
      %835 = vmatprep.mubr.f32.mxu0 0.0
      %836 = vmatmul.mubr.f32.gmra.mrb[0].mxu0 %v696
      %v837 = vpop.f32.mrb[0].mxu0
      %v838 = vadd.f32 0.0, %v837
      %v839 = vpop.f32.mrb[0].mxu0
      %v840 = vadd.f32 0.0, %v839
      %841 = vdwg.mxu0
      %v842 = vld [vmem:[%s5] sm:$0xff]
      %v843 = vld [vmem:[%s5 + $0x8] sm:$0xff]
      %v844 = vld [vmem:[%s5 + $0x10] sm:$0xff]
      %v845 = vld [vmem:[%s5 + $0x18] sm:$0xff]
      %v846 = vld [vmem:[%s5 + $0x20] sm:$0xff]
      %847 = vmatprep.subr.mxu0 0.0
      %848 = vmatpush1.xpose.msra.mxu0 %v796
      %849 = vmatprep.subr.mxu0 0.0
      %850 = vmatpush1.xpose.msra.mxu0 %v802
      %851 = vmatprep.subr.mxu0 0.0
      %852 = vmatpush1.xpose.msra.mxu0 %v808
      %853 = vmatprep.subr.mxu0 0.0
      %854 = vmatpush1.xpose.msra.mxu0 %v814
      %855 = vmatprep.subr.mxu0 0.0
      %856 = vmatpush1.xpose.msra.mxu0 %v820
      %857 = vmatprep.subr.mxu0 0.0
      %858 = vmatpush1.xpose.msra.mxu0 %v826
      %859 = vmatprep.subr.mxu0 0.0
      %860 = vmatpush1.xpose.msra.mxu0 %v832
      %861 = vmatprep.subr.mxu0 0.0
      %862 = vmatpush1.xpose.msra.mxu0 %v838
      %863 = vmatprep.subr.mxu0 0.0
      %864 = vmatpush1.xpose.msra.mxu0 0.0
      %865 = vmatprep.subr.mxu0 0.0
      %866 = vmatpush1.xpose.msra.mxu0 0.0
      %867 = vmatprep.subr.mxu0 0.0
      %868 = vmatpush1.xpose.msra.mxu0 0.0
      %869 = vmatprep.subr.mxu0 0.0
      %870 = vmatpush1.xpose.msra.mxu0 0.0
      %871 = vmatprep.subr.mxu0 0.0
      %872 = vmatpush1.xpose.msra.mxu0 0.0
      %873 = vmatprep.subr.mxu0 0.0
      %874 = vmatpush1.xpose.msra.mxu0 0.0
      %875 = vmatprep.subr.mxu0 0.0
      %876 = vmatpush1.xpose.msra.mxu0 0.0
      %877 = vmatprep.subr.mxu0 0.0
      %878 = vmatpush1.xpose.msra.mxu0 0.0
      %879 = vmatprep.subr.mxu0 0.0
      %880 = vmatpush1.xpose.msra.mxu0 0.0
      %881 = vmatprep.subr.mxu0 0.0
      %882 = vmatpush1.xpose.msra.mxu0 0.0
      %883 = vmatprep.subr.mxu0 0.0
      %884 = vmatpush1.xpose.msra.mxu0 0.0
      %885 = vmatprep.subr.mxu0 0.0
      %886 = vmatpush1.xpose.msra.mxu0 0.0
      %887 = vmatprep.subr.mxu0 0.0
      %888 = vmatpush1.xpose.msra.mxu0 0.0
      %889 = vmatprep.subr.mxu0 0.0
      %890 = vmatpush1.xpose.msra.mxu0 0.0
      %891 = vmatprep.subr.mxu0 0.0
      %892 = vmatpush1.xpose.msra.mxu0 0.0
      %893 = vmatprep.subr.mxu0 0.0
      %894 = vmatpush1.xpose.msra.mxu0 0.0
      %895 = vmatprep.subr.mxu0 0.0
      %896 = vmatpush1.xpose.msra.mxu0 0.0
      %897 = vmatprep.subr.mxu0 0.0
      %898 = vmatpush1.xpose.msra.mxu0 0.0
      %899 = vmatprep.subr.mxu0 0.0
      %900 = vmatpush1.xpose.msra.mxu0 0.0
      %901 = vmatprep.subr.mxu0 0.0
      %902 = vmatpush1.xpose.msra.mxu0 0.0
      %903 = vmatprep.subr.mxu0 0.0
      %904 = vmatpush1.xpose.msra.mxu0 0.0
      %905 = vmatprep.subr.mxu0 0.0
      %906 = vmatpush1.xpose.msra.mxu0 0.0
      %907 = vmatprep.subr.mxu0 0.0
      %908 = vmatpush1.xpose.msra.mxu0 0.0
      %909 = vmatprep.subr.mxu0 0.0
      %910 = vmatpush1.xpose.msra.mxu0 0.0
      %911 = vmatprep.mubr.f32.mxu0 0.0
      %912 = vmatmul.mubr.f32.gmra.mrb[0].mxu0 %v842
      %v913 = vpop.f32.mrb[0].mxu0
      %v914 = vadd.f32 0.0, %v913
      %v915 = vpop.f32.mrb[0].mxu0
      %916 = vmatprep.mubr.f32.mxu0 0.0
      %917 = vmatmul.mubr.f32.gmra.mrb[0].mxu0 %v843
      %v918 = vpop.f32.mrb[0].mxu0
      %v919 = vadd.f32 0.0, %v918
      %v920 = vpop.f32.mrb[0].mxu0
      %921 = vmatprep.mubr.f32.mxu0 0.0
      %922 = vmatmul.mubr.f32.gmra.mrb[0].mxu0 %v844
      %v923 = vpop.f32.mrb[0].mxu0
      %v924 = vadd.f32 0.0, %v923
      %v925 = vpop.f32.mrb[0].mxu0
      %926 = vmatprep.mubr.f32.mxu0 0.0
      %927 = vmatmul.mubr.f32.gmra.mrb[0].mxu0 %v845
      %v928 = vpop.f32.mrb[0].mxu0
      %v929 = vadd.f32 0.0, %v928
      %v930 = vpop.f32.mrb[0].mxu0
      %931 = vmatprep.mubr.f32.mxu0 0.0
      %932 = vmatmul.mubr.f32.gmra.mrb[0].mxu0 %v846
      %v933 = vpop.f32.mrb[0].mxu0
      %v934 = vadd.f32 0.0, %v933
      %v935 = vpop.f32.mrb[0].mxu0
      %936 = vdwg.mxu0
      %vm937 = vcmask 523264
      %v938 = vsel %vm937, %v914, -inf
      %939 = vmax.xlane.f32.xlu0 %v938
      %v940 = vpop.xlane.xlu0 %939
      %v941 = vsel %vm937, %v919, -inf
      %942 = vmax.xlane.f32.xlu0 %v941
      %v943 = vpop.xlane.xlu0 %942
      %v944 = vsel %vm937, %v924, -inf
      %945 = vmax.xlane.f32.xlu0 %v944
      %v946 = vpop.xlane.xlu0 %945
      %v947 = vsel %vm937, %v929, -inf
      %948 = vmax.xlane.f32.xlu0 %v947
      %v949 = vpop.xlane.xlu0 %948
      %v950 = vsel %vm937, %v934, -inf
      %951 = vmax.xlane.f32.xlu0 %v950
      %v952 = vpop.xlane.xlu0 %951
      %v953 = vsub.f32 %v914, %v940
      %v954 = vsub.f32 %v919, %v943
      %v955 = vsub.f32 %v924, %v946
      %v956 = vsub.f32 %v929, %v949
      %v957 = vsub.f32 %v934, %v952
      %v958 = vmul.f32 %v953, 1.442695
      %v959 = vpow.pop %v958
      %v960 = vmul.f32 %v954, 1.442695
      %v961 = vpow.pop %v960
      %v962 = vmul.f32 %v955, 1.442695
      %v963 = vpow.pop %v962
      %v964 = vmul.f32 %v956, 1.442695
      %v965 = vpow.pop %v964
      %v966 = vmul.f32 %v957, 1.442695
      %v967 = vpow.pop %v966
      %v968 = vsel %vm937, %v959, 0.0
      %969 = vadd.xlane.f32.xlu0 %v968
      %v970 = vpop.xlane.xlu0 %969
      %v971 = vsel %vm937, %v961, 0.0
      %972 = vadd.xlane.f32.xlu0 %v971
      %v973 = vpop.xlane.xlu0 %972
      %v974 = vsel %vm937, %v963, 0.0
      %975 = vadd.xlane.f32.xlu0 %v974
      %v976 = vpop.xlane.xlu0 %975
      %v977 = vsel %vm937, %v965, 0.0
      %978 = vadd.xlane.f32.xlu0 %v977
      %v979 = vpop.xlane.xlu0 %978
      %v980 = vsel %vm937, %v967, 0.0
      %981 = vadd.xlane.f32.xlu0 %v980
      %v982 = vpop.xlane.xlu0 %981
      %v983 = vrcp.pop %v970
      %v984 = vmul.f32 %v959, %v983
      %v985 = vrcp.pop %v973
      %v986 = vmul.f32 %v961, %v985
      %v987 = vrcp.pop %v976
      %v988 = vmul.f32 %v963, %v987
      %v989 = vrcp.pop %v979
      %v990 = vmul.f32 %v965, %v989
      %v991 = vrcp.pop %v982
      %v992 = vmul.f32 %v967, %v991
      %v994 = vsel %vm937, %v984, 0
      %v997 = vsel %vm937, %v986, 0
      %v1000 = vsel %vm937, %v988, 0
      %v1003 = vsel %vm937, %v990, 0
      %v1006 = vsel %vm937, %v992, 0
      %1008 = vmatprep.subr.mxu0 0.0
      %1009 = vmatpush1.msra.mxu0 %v798
      %1010 = vmatprep.subr.mxu0 0.0
      %1011 = vmatpush1.msra.mxu0 %v804
      %1012 = vmatprep.subr.mxu0 0.0
      %1013 = vmatpush1.msra.mxu0 %v810
      %1014 = vmatprep.subr.mxu0 0.0
      %1015 = vmatpush1.msra.mxu0 %v816
      %1016 = vmatprep.subr.mxu0 0.0
      %1017 = vmatpush1.msra.mxu0 %v822
      %1018 = vmatprep.subr.mxu0 0.0
      %1019 = vmatpush1.msra.mxu0 %v828
      %1020 = vmatprep.subr.mxu0 0.0
      %1021 = vmatpush1.msra.mxu0 %v834
      %1022 = vmatprep.subr.mxu0 0.0
      %1023 = vmatpush1.msra.mxu0 %v840
      %1024 = vmatprep.subr.mxu0 0.0
      %1025 = vmatpush1.msra.mxu0 0.0
      %1026 = vmatprep.subr.mxu0 0.0
      %1027 = vmatpush1.msra.mxu0 0.0
      %1028 = vmatprep.subr.mxu0 0.0
      %1029 = vmatpush1.msra.mxu0 0.0
      %1030 = vmatprep.subr.mxu0 0.0
      %1031 = vmatpush1.msra.mxu0 0.0
      %1032 = vmatprep.subr.mxu0 0.0
      %1033 = vmatpush1.msra.mxu0 0.0
      %1034 = vmatprep.subr.mxu0 0.0
      %1035 = vmatpush1.msra.mxu0 0.0
      %1036 = vmatprep.subr.mxu0 0.0
      %1037 = vmatpush1.msra.mxu0 0.0
      %1038 = vmatprep.subr.mxu0 0.0
      %1039 = vmatpush1.msra.mxu0 0.0
      %1040 = vmatprep.subr.mxu0 0.0
      %1041 = vmatpush1.msra.mxu0 0.0
      %1042 = vmatprep.subr.mxu0 0.0
      %1043 = vmatpush1.msra.mxu0 0.0
      %1044 = vmatprep.subr.mxu0 0.0
      %1045 = vmatpush1.msra.mxu0 0.0
      %1046 = vmatprep.subr.mxu0 0.0
      %1047 = vmatpush1.msra.mxu0 0.0
      %1048 = vmatprep.subr.mxu0 0.0
      %1049 = vmatpush1.msra.mxu0 0.0
      %1050 = vmatprep.subr.mxu0 0.0
      %1051 = vmatpush1.msra.mxu0 0.0
      %1052 = vmatprep.subr.mxu0 0.0
      %1053 = vmatpush1.msra.mxu0 0.0
      %1054 = vmatprep.subr.mxu0 0.0
      %1055 = vmatpush1.msra.mxu0 0.0
      %1056 = vmatprep.subr.mxu0 0.0
      %1057 = vmatpush1.msra.mxu0 0.0
      %1058 = vmatprep.subr.mxu0 0.0
      %1059 = vmatpush1.msra.mxu0 0.0
      %1060 = vmatprep.subr.mxu0 0.0
      %1061 = vmatpush1.msra.mxu0 0.0
      %1062 = vmatprep.subr.mxu0 0.0
      %1063 = vmatpush1.msra.mxu0 0.0
      %1064 = vmatprep.subr.mxu0 0.0
      %1065 = vmatpush1.msra.mxu0 0.0
      %1066 = vmatprep.subr.mxu0 0.0
      %1067 = vmatpush1.msra.mxu0 0.0
      %1068 = vmatprep.subr.mxu0 0.0
      %1069 = vmatpush1.msra.mxu0 0.0
      %1070 = vmatprep.subr.mxu0 0.0
      %1071 = vmatpush1.msra.mxu0 0.0
      %1072 = vmatprep.mubr.f32.mxu0 0.0
      %1073 = vmatmul.mubr.f32.gmra.mrb[0].mxu0 %v994
      %v1074 = vpop.f32.mrb[0].mxu0
      %v1075 = vadd.f32 0.0, %v1074
      %v1076 = vpop.f32.mrb[0].mxu0
      %1077 = vmatprep.mubr.f32.mxu0 0.0
      %1078 = vmatmul.mubr.f32.gmra.mrb[0].mxu0 %v997
      %v1079 = vpop.f32.mrb[0].mxu0
      %v1080 = vadd.f32 0.0, %v1079
      %v1081 = vpop.f32.mrb[0].mxu0
      %1082 = vmatprep.mubr.f32.mxu0 0.0
      %1083 = vmatmul.mubr.f32.gmra.mrb[0].mxu0 %v1000
      %v1084 = vpop.f32.mrb[0].mxu0
      %v1085 = vadd.f32 0.0, %v1084
      %v1086 = vpop.f32.mrb[0].mxu0
      %1087 = vmatprep.mubr.f32.mxu0 0.0
      %1088 = vmatmul.mubr.f32.gmra.mrb[0].mxu0 %v1003
      %v1089 = vpop.f32.mrb[0].mxu0
      %v1090 = vadd.f32 0.0, %v1089
      %v1091 = vpop.f32.mrb[0].mxu0
      %1092 = vmatprep.mubr.f32.mxu0 0.0
      %1093 = vmatmul.mubr.f32.gmra.mrb[0].mxu0 %v1006
      %v1094 = vpop.f32.mrb[0].mxu0
      %v1095 = vadd.f32 0.0, %v1094
      %v1096 = vpop.f32.mrb[0].mxu0
      %1097 = vdwg.mxu0
      %v1098 = vld [vmem:[%s7] sm:$0x1]
      %v1099 = vlaneseq
      %v1100 = vshrl.u32 %v1099, 7
      %v1101 = vsub.s32 0, %v1100
      %v1102 = vrot.slane %v1098, %v1101
      %v1103 = vmul.f32 %v1075, %v1102
      %v1104 = vmul.f32 %v1080, %v1102
      %v1105 = vld [vmem:[%s7 + $0x1] sm:$0x1]
      %v1106 = vlaneseq
      %v1107 = vshrl.u32 %v1106, 7
      %v1108 = vsub.s32 0, %v1107
      %v1109 = vrot.slane %v1105, %v1108
      %v1110 = vmul.f32 %v1080, %v1109
      %v1111 = vmul.f32 %v1085, %v1109
      %vm1114 = vcmask 1045504
      %v1115 = vrot.slane %v1110, 2
      %v1116 = vrot.slane %v1111, 2
      %v1117 = vsel %vm1114, %v1115, %v1116
      %v1120 = vadd.f32 %v1103, %v1117
      %v1121 = vadd.f32 %v1104, %v1116
      %v1122 = vld [vmem:[%s7 + $0x2] sm:$0x1]
      %v1123 = vlaneseq
      %v1124 = vshrl.u32 %v1123, 7
      %v1125 = vsub.s32 0, %v1124
      %v1126 = vrot.slane %v1122, %v1125
      %v1127 = vmul.f32 %v1085, %v1126
      %v1128 = vmul.f32 %v1090, %v1126
      %vm1131 = vcmask 1043456
      %v1132 = vrot.slane %v1127, 4
      %v1133 = vrot.slane %v1128, 4
      %v1134 = vsel %vm1131, %v1132, %v1133
      %v1137 = vadd.f32 %v1120, %v1134
      %v1138 = vadd.f32 %v1121, %v1133
      %v1139 = vld [vmem:[%s7 + $0x3] sm:$0x1]
      %v1140 = vlaneseq
      %v1141 = vshrl.u32 %v1140, 7
      %v1142 = vsub.s32 0, %v1141
      %v1143 = vrot.slane %v1139, %v1142
      %v1144 = vmul.f32 %v1090, %v1143
      %v1145 = vmul.f32 %v1095, %v1143
      %vm1148 = vcmask 1041408
      %v1149 = vrot.slane %v1144, 6
      %v1150 = vrot.slane %v1145, 6
      %v1151 = vsel %vm1148, %v1149, %v1150
      %v1154 = vadd.f32 %v1137, %v1151
      %v1155 = vadd.f32 %v1138, %v1150
      %1156 = vst [vmem:[%s305] sm:$0xff] %v1154
      %1157 = vst [vmem:[%s305 + $0x8] sm:$0x3] %v1155
      %p1158 = scmp.lt.s32.totalorder %s19, 1
      %s1159 = scalar_select %p1158, %s19, 1
      %s1160 = smul.addr %s1159, 2
      %s1161 = smul.addr %s1160, 8
      %s1162 = scalar_lea.vmem %s8, %s1161
      // Predicated region
      $region53: #{query_sa_block_pallas.2} parent=51 // pred_check
        %p1163 = pneg %p210
      $region54: #{query_sa_block_pallas.2} parent=51 // pred_check_branch
        %1165 = sbr.rel (%p1163) target = $region56
      $region55: #{query_sa_block_pallas.2} parent=51 // pred_region
        _
      $region56: #{query_sa_block_pallas.2} parent=51 // pred_fallthru
        _
    $region52: #{query_sa_block_pallas.2} parent=5 // pred_fallthru
      _
    %p1166 = scmp.le.s32.totalorder 2, %s14
    // Predicated region
    $region57: #{query_sa_block_pallas.2} parent=5 // pred_check
      %p1167 = pneg %p1166
    $region58: #{query_sa_block_pallas.2} parent=5 // pred_check_branch
      %1169 = sbr.rel (%p1167) target = $region60
    $region59: #{query_sa_block_pallas.2} parent=5 // pred_region
      %s1170 = ssub.s32 %s14, 2
      // Predicated region
      $region61: #{query_sa_block_pallas.2} parent=59 // pred_check
        %p1171 = pneg %p216
      $region62: #{query_sa_block_pallas.2} parent=59 // pred_check_branch
        %1173 = sbr.rel (%p1171) target = $region64
      $region63: #{query_sa_block_pallas.2} parent=59 // pred_region
        %p1174 = scmp.lt.s32.totalorder %s20, 1
        %s1175 = scalar_select %p1174, %s20, 1
        %s1176 = smul.addr %s1175, 2
        %s1177 = smul.addr %s1176, 8
        %s1178 = scalar_lea.vmem %s8, %s1177
      $region64: #{query_sa_block_pallas.2} parent=59 // pred_fallthru
        _
    $region60: #{query_sa_block_pallas.2} parent=5 // pred_fallthru
      _
  $region6: #{query_sa_block_pallas.2} parent=0 // loop_footer
    %s18 = sadd.s32 1, %s14
  $region7: #{query_sa_block_pallas.2} parent=0 // loop_footer_branch
    %13 = sbr.rel target = $region3
  $region8: #{query_sa_block_pallas.2} parent=0 // loop_exit
    _

// kernel: query_sa_block_pallas.3
$region0: #{query_sa_block_pallas.3}
  #allocation0 [shape = 'u32[]', space=smem, size = 0x4, offset = 0x4, fixed_abs, tag = 'smem constant byte address 0x4 - core index']
  #allocation1 [shape = 'u32[144,128]{1,0:T(1,128)}', space=vmem, size = 0x12000, scoped, tag = 'internal scratch']
  %s0 = inlined_call_operand.vmem [shape: f32[20,128], index: 0, kind: input, shape index: {}]
  %s1 = inlined_call_operand.vmem [shape: f32[128,128], index: 1, kind: input, shape index: {}]
  %s2 = inlined_call_operand.vmem [shape: f32[1,128], index: 2, kind: input, shape index: {}]
  %s3 = inlined_call_operand.vmem [shape: f32[1,128], index: 3, kind: input, shape index: {}]
  %s4 = inlined_call_operand.vmem [shape: f32[1,128], index: 4, kind: input, shape index: {}]
  %s5 = inlined_call_operand.vmem [shape: f32[128,512], index: 5, kind: input, shape index: {}]
  %s6 = inlined_call_operand.vmem [shape: f32[1,512], index: 6, kind: input, shape index: {}]
  %s7 = inlined_call_operand.vmem [shape: f32[512,128], index: 7, kind: input, shape index: {}]
  %s8 = inlined_call_operand.vmem [shape: f32[1,128], index: 8, kind: input, shape index: {}]
  %s9 = inlined_call_operand.vmem [shape: f32[20,128], index: 9, kind: output, shape index: {}]
  %s10 = sld [smem:[#allocation0]]
  $region46: #{query_sa_block_pallas.3} parent=0
    _
  %s12 = ssub.s32 1, %s10
  %s13 = scalar_select 0, %s12, %s10
  // Predicated region
  $region2: #{query_sa_block_pallas.3} parent=0 // pred_check
    _
  $region3: #{query_sa_block_pallas.3} parent=0 // pred_check_branch
    %15 = sbr.rel (0) target = $region5
  $region4: #{query_sa_block_pallas.3} parent=0 // pred_region
    _
  $region5: #{query_sa_block_pallas.3} parent=0 // pred_fallthru
    _
  // Predicated region
  $region6: #{query_sa_block_pallas.3} parent=0 // pred_check
    _
  $region7: #{query_sa_block_pallas.3} parent=0 // pred_check_branch
    %17 = sbr.rel (0) target = $region9
  $region8: #{query_sa_block_pallas.3} parent=0 // pred_region
    _
  $region9: #{query_sa_block_pallas.3} parent=0 // pred_fallthru
    _
  // Predicated region
  $region10: #{query_sa_block_pallas.3} parent=0 // pred_check
    _
  $region11: #{query_sa_block_pallas.3} parent=0 // pred_check_branch
    %19 = sbr.rel (0) target = $region13
  $region12: #{query_sa_block_pallas.3} parent=0 // pred_region
    _
  $region13: #{query_sa_block_pallas.3} parent=0 // pred_fallthru
    _
  // Predicated region
  $region14: #{query_sa_block_pallas.3} parent=0 // pred_check
    _
  $region15: #{query_sa_block_pallas.3} parent=0 // pred_check_branch
    %21 = sbr.rel (0) target = $region17
  $region16: #{query_sa_block_pallas.3} parent=0 // pred_region
    _
  $region17: #{query_sa_block_pallas.3} parent=0 // pred_fallthru
    _
  // Predicated region
  $region18: #{query_sa_block_pallas.3} parent=0 // pred_check
    _
  $region19: #{query_sa_block_pallas.3} parent=0 // pred_check_branch
    %23 = sbr.rel (0) target = $region21
  $region20: #{query_sa_block_pallas.3} parent=0 // pred_region
    _
  $region21: #{query_sa_block_pallas.3} parent=0 // pred_fallthru
    _
  // Predicated region
  $region22: #{query_sa_block_pallas.3} parent=0 // pred_check
    _
  $region23: #{query_sa_block_pallas.3} parent=0 // pred_check_branch
    %25 = sbr.rel (0) target = $region25
  $region24: #{query_sa_block_pallas.3} parent=0 // pred_region
    _
  $region25: #{query_sa_block_pallas.3} parent=0 // pred_fallthru
    _
  // Predicated region
  $region26: #{query_sa_block_pallas.3} parent=0 // pred_check
    _
  $region27: #{query_sa_block_pallas.3} parent=0 // pred_check_branch
    %27 = sbr.rel (0) target = $region29
  $region28: #{query_sa_block_pallas.3} parent=0 // pred_region
    _
  $region29: #{query_sa_block_pallas.3} parent=0 // pred_fallthru
    _
  // Predicated region
  $region30: #{query_sa_block_pallas.3} parent=0 // pred_check
    _
  $region31: #{query_sa_block_pallas.3} parent=0 // pred_check_branch
    %29 = sbr.rel (0) target = $region33
  $region32: #{query_sa_block_pallas.3} parent=0 // pred_region
    _
  $region33: #{query_sa_block_pallas.3} parent=0 // pred_fallthru
    _
  // Predicated region
  $region34: #{query_sa_block_pallas.3} parent=0 // pred_check
    _
  $region35: #{query_sa_block_pallas.3} parent=0 // pred_check_branch
    %31 = sbr.rel (0) target = $region37
  $region36: #{query_sa_block_pallas.3} parent=0 // pred_region
    _
  $region37: #{query_sa_block_pallas.3} parent=0 // pred_fallthru
    _
  %v32 = vld [vmem:[%s0] sm:$0xff]
  %v33 = vld [vmem:[%s0 + $0x8] sm:$0xff]
  %v34 = vld [vmem:[%s0 + $0x10] sm:$0xf]
  %v35 = vld [vmem:[%s1] sm:$0xff]
  %v36 = vld [vmem:[%s1 + $0x8] sm:$0xff]
  %v37 = vld [vmem:[%s1 + $0x10] sm:$0xff]
  %v38 = vld [vmem:[%s1 + $0x18] sm:$0xff]
  %v39 = vld [vmem:[%s1 + $0x20] sm:$0xff]
  %v40 = vld [vmem:[%s1 + $0x28] sm:$0xff]
  %v41 = vld [vmem:[%s1 + $0x30] sm:$0xff]
  %v42 = vld [vmem:[%s1 + $0x38] sm:$0xff]
  %v43 = vld [vmem:[%s1 + $0x40] sm:$0xff]
  %v44 = vld [vmem:[%s1 + $0x48] sm:$0xff]
  %v45 = vld [vmem:[%s1 + $0x50] sm:$0xff]
  %v46 = vld [vmem:[%s1 + $0x58] sm:$0xff]
  %v47 = vld [vmem:[%s1 + $0x60] sm:$0xff]
  %v48 = vld [vmem:[%s1 + $0x68] sm:$0xff]
  %v49 = vld [vmem:[%s1 + $0x70] sm:$0xff]
  %v50 = vld [vmem:[%s1 + $0x78] sm:$0xff]
  %v51 = vld [vmem:[%s2] sm:$0x1]
  %v53 = vlaneseq
  %v54 = vshrl.u32 %v53, 7
  %v55 = vsub.s32 0, %v54
  %v56 = vrot.slane %v51, %v55
  %58 = vmatprep.subr.mxu0 0.0
  %59 = vmatpush1.msra.mxu0 %v35
  %60 = vmatprep.subr.mxu0 0.0
  %61 = vmatpush1.msra.mxu0 %v36
  %62 = vmatprep.subr.mxu0 0.0
  %63 = vmatpush1.msra.mxu0 %v37
  %64 = vmatprep.subr.mxu0 0.0
  %65 = vmatpush1.msra.mxu0 %v38
  %66 = vmatprep.subr.mxu0 0.0
  %67 = vmatpush1.msra.mxu0 %v39
  %68 = vmatprep.subr.mxu0 0.0
  %69 = vmatpush1.msra.mxu0 %v40
  %70 = vmatprep.subr.mxu0 0.0
  %71 = vmatpush1.msra.mxu0 %v41
  %72 = vmatprep.subr.mxu0 0.0
  %73 = vmatpush1.msra.mxu0 %v42
  %74 = vmatprep.subr.mxu0 0.0
  %75 = vmatpush1.msra.mxu0 %v43
  %76 = vmatprep.subr.mxu0 0.0
  %77 = vmatpush1.msra.mxu0 %v44
  %78 = vmatprep.subr.mxu0 0.0
  %79 = vmatpush1.msra.mxu0 %v45
  %80 = vmatprep.subr.mxu0 0.0
  %81 = vmatpush1.msra.mxu0 %v46
  %82 = vmatprep.subr.mxu0 0.0
  %83 = vmatpush1.msra.mxu0 %v47
  %84 = vmatprep.subr.mxu0 0.0
  %85 = vmatpush1.msra.mxu0 %v48
  %86 = vmatprep.subr.mxu0 0.0
  %87 = vmatpush1.msra.mxu0 %v49
  %88 = vmatprep.subr.mxu0 0.0
  %89 = vmatpush1.msra.mxu0 %v50
  %90 = vmatprep.subr.mxu0 0.0
  %91 = vmatpush1.msra.mxu0 0.0
  %92 = vmatprep.subr.mxu0 0.0
  %93 = vmatpush1.msra.mxu0 0.0
  %94 = vmatprep.subr.mxu0 0.0
  %95 = vmatpush1.msra.mxu0 0.0
  %96 = vmatprep.subr.mxu0 0.0
  %97 = vmatpush1.msra.mxu0 0.0
  %98 = vmatprep.subr.mxu0 0.0
  %99 = vmatpush1.msra.mxu0 0.0
  %100 = vmatprep.subr.mxu0 0.0
  %101 = vmatpush1.msra.mxu0 0.0
  %102 = vmatprep.subr.mxu0 0.0
  %103 = vmatpush1.msra.mxu0 0.0
  %104 = vmatprep.subr.mxu0 0.0
  %105 = vmatpush1.msra.mxu0 0.0
  %106 = vmatprep.subr.mxu0 0.0
  %107 = vmatpush1.msra.mxu0 0.0
  %108 = vmatprep.subr.mxu0 0.0
  %109 = vmatpush1.msra.mxu0 0.0
  %110 = vmatprep.subr.mxu0 0.0
  %111 = vmatpush1.msra.mxu0 0.0
  %112 = vmatprep.subr.mxu0 0.0
  %113 = vmatpush1.msra.mxu0 0.0
  %114 = vmatprep.subr.mxu0 0.0
  %115 = vmatpush1.msra.mxu0 0.0
  %116 = vmatprep.subr.mxu0 0.0
  %117 = vmatpush1.msra.mxu0 0.0
  %118 = vmatprep.subr.mxu0 0.0
  %119 = vmatpush1.msra.mxu0 0.0
  %120 = vmatprep.subr.mxu0 0.0
  %121 = vmatpush1.msra.mxu0 0.0
  %122 = vmatprep.mubr.f32.mxu0 0.0
  %123 = vmatmul.mubr.f32.gmra.mrb[0].mxu0 %v32
  %v124 = vpop.f32.mrb[0].mxu0
  %v125 = vadd.f32 %v56, %v124
  %v126 = vpop.f32.mrb[0].mxu0
  %127 = vmatprep.mubr.f32.mxu0 0.0
  %128 = vmatmul.mubr.f32.gmra.mrb[0].mxu0 %v33
  %v129 = vpop.f32.mrb[0].mxu0
  %v130 = vadd.f32 %v56, %v129
  %v131 = vpop.f32.mrb[0].mxu0
  %132 = vmatprep.mubr.f32.mxu0 0.0
  %133 = vmatmul.mubr.f32.gmra.mrb[0].mxu0 %v34
  %v134 = vpop.f32.mrb[0].mxu0
  %v135 = vadd.f32 %v56, %v134
  %v136 = vpop.f32.mrb[0].mxu0
  %137 = vdwg.mxu0
  %v138 = vld [vmem:[%s3] sm:$0x1]
  %v139 = vld [vmem:[%s4] sm:$0x1]
  %140 = vadd.xlane.f32.xlu0 %v125
  %v141 = vpop.xlane.xlu0 %140
  %142 = vadd.xlane.f32.xlu0 %v130
  %v143 = vpop.xlane.xlu0 %142
  %vm144 = vcmask 1043456
  %v145 = vsel %vm144, %v135, 0.0
  %146 = vadd.xlane.f32.xlu0 %v145
  %v147 = vpop.xlane.xlu0 %146
  %v148 = vrcp.pop 128.0
  %v149 = vmul.f32 %v141, %v148
  %v150 = vmul.f32 %v143, %v148
  %v151 = vmul.f32 %v147, %v148
  %v152 = vsub.f32 %v125, %v149
  %v153 = vsub.f32 %v130, %v150
  %v154 = vsub.f32 %v135, %v151
  %v155 = vmul.f32 %v152, %v152
  %v156 = vmul.f32 %v153, %v153
  %v157 = vmul.f32 %v154, %v154
  %158 = vadd.xlane.f32.xlu0 %v155
  %v159 = vpop.xlane.xlu0 %158
  %160 = vadd.xlane.f32.xlu0 %v156
  %v161 = vpop.xlane.xlu0 %160
  %v162 = vsel %vm144, %v157, 0.0
  %163 = vadd.xlane.f32.xlu0 %v162
  %v164 = vpop.xlane.xlu0 %163
  %v165 = vmul.f32 %v159, %v148
  %v166 = vmul.f32 %v161, %v148
  %v167 = vmul.f32 %v164, %v148
  %v168 = vadd.f32 %v165, 1e-05
  %v169 = vadd.f32 %v166, 1e-05
  %v170 = vadd.f32 %v167, 1e-05
  %v171 = vrsqrt.pop %v168
  %v172 = vrsqrt.pop %v169
  %v173 = vrsqrt.pop %v170
  %v174 = vmul.f32 %v152, %v171
  %v175 = vmul.f32 %v153, %v172
  %v176 = vmul.f32 %v154, %v173
  %v178 = vlaneseq
  %v179 = vshrl.u32 %v178, 7
  %v180 = vsub.s32 0, %v179
  %v181 = vrot.slane %v138, %v180
  %v183 = vmul.f32 %v174, %v181
  %v184 = vmul.f32 %v175, %v181
  %v185 = vmul.f32 %v176, %v181
  %v187 = vlaneseq
  %v188 = vshrl.u32 %v187, 7
  %v189 = vsub.s32 0, %v188
  %v190 = vrot.slane %v139, %v189
  %v192 = vadd.f32 %v183, %v190
  %v193 = vadd.f32 %v184, %v190
  %v194 = vadd.f32 %v185, %v190
  %v195 = vld [vmem:[%s5] sm:$0xff]
  %v196 = vld [vmem:[%s5 + $0x8] sm:$0xff]
  %v197 = vld [vmem:[%s5 + $0x10] sm:$0xff]
  %v198 = vld [vmem:[%s5 + $0x18] sm:$0xff]
  %v199 = vld [vmem:[%s5 + $0x20] sm:$0xff]
  %v200 = vld [vmem:[%s5 + $0x28] sm:$0xff]
  %v201 = vld [vmem:[%s5 + $0x30] sm:$0xff]
  %v202 = vld [vmem:[%s5 + $0x38] sm:$0xff]
  %v203 = vld [vmem:[%s5 + $0x40] sm:$0xff]
  %v204 = vld [vmem:[%s5 + $0x48] sm:$0xff]
  %v205 = vld [vmem:[%s5 + $0x50] sm:$0xff]
  %v206 = vld [vmem:[%s5 + $0x58] sm:$0xff]
  %v207 = vld [vmem:[%s5 + $0x60] sm:$0xff]
  %v208 = vld [vmem:[%s5 + $0x68] sm:$0xff]
  %v209 = vld [vmem:[%s5 + $0x70] sm:$0xff]
  %v210 = vld [vmem:[%s5 + $0x78] sm:$0xff]
  %v211 = vld [vmem:[%s5 + $0x80] sm:$0xff]
  %v212 = vld [vmem:[%s5 + $0x88] sm:$0xff]
  %v213 = vld [vmem:[%s5 + $0x90] sm:$0xff]
  %v214 = vld [vmem:[%s5 + $0x98] sm:$0xff]
  %v215 = vld [vmem:[%s5 + $0xa0] sm:$0xff]
  %v216 = vld [vmem:[%s5 + $0xa8] sm:$0xff]
  %v217 = vld [vmem:[%s5 + $0xb0] sm:$0xff]
  %v218 = vld [vmem:[%s5 + $0xb8] sm:$0xff]
  %v219 = vld [vmem:[%s5 + $0xc0] sm:$0xff]
  %v220 = vld [vmem:[%s5 + $0xc8] sm:$0xff]
  %v221 = vld [vmem:[%s5 + $0xd0] sm:$0xff]
  %v222 = vld [vmem:[%s5 + $0xd8] sm:$0xff]
  %v223 = vld [vmem:[%s5 + $0xe0] sm:$0xff]
  %v224 = vld [vmem:[%s5 + $0xe8] sm:$0xff]
  %v225 = vld [vmem:[%s5 + $0xf0] sm:$0xff]
  %v226 = vld [vmem:[%s5 + $0xf8] sm:$0xff]
  %v227 = vld [vmem:[%s5 + $0x100] sm:$0xff]
  %v228 = vld [vmem:[%s5 + $0x108] sm:$0xff]
  %v229 = vld [vmem:[%s5 + $0x110] sm:$0xff]
  %v230 = vld [vmem:[%s5 + $0x118] sm:$0xff]
  %v231 = vld [vmem:[%s5 + $0x120] sm:$0xff]
  %v232 = vld [vmem:[%s5 + $0x128] sm:$0xff]
  %v233 = vld [vmem:[%s5 + $0x130] sm:$0xff]
  %v234 = vld [vmem:[%s5 + $0x138] sm:$0xff]
  %v235 = vld [vmem:[%s5 + $0x140] sm:$0xff]
  %v236 = vld [vmem:[%s5 + $0x148] sm:$0xff]
  %v237 = vld [vmem:[%s5 + $0x150] sm:$0xff]
  %v238 = vld [vmem:[%s5 + $0x158] sm:$0xff]
  %v239 = vld [vmem:[%s5 + $0x160] sm:$0xff]
  %v240 = vld [vmem:[%s5 + $0x168] sm:$0xff]
  %v241 = vld [vmem:[%s5 + $0x170] sm:$0xff]
  %v242 = vld [vmem:[%s5 + $0x178] sm:$0xff]
  %v243 = vld [vmem:[%s5 + $0x180] sm:$0xff]
  %v244 = vld [vmem:[%s5 + $0x188] sm:$0xff]
  %v245 = vld [vmem:[%s5 + $0x190] sm:$0xff]
  %v246 = vld [vmem:[%s5 + $0x198] sm:$0xff]
  %v247 = vld [vmem:[%s5 + $0x1a0] sm:$0xff]
  %v248 = vld [vmem:[%s5 + $0x1a8] sm:$0xff]
  %v249 = vld [vmem:[%s5 + $0x1b0] sm:$0xff]
  %v250 = vld [vmem:[%s5 + $0x1b8] sm:$0xff]
  %v251 = vld [vmem:[%s5 + $0x1c0] sm:$0xff]
  %v252 = vld [vmem:[%s5 + $0x1c8] sm:$0xff]
  %v253 = vld [vmem:[%s5 + $0x1d0] sm:$0xff]
  %v254 = vld [vmem:[%s5 + $0x1d8] sm:$0xff]
  %v255 = vld [vmem:[%s5 + $0x1e0] sm:$0xff]
  %v256 = vld [vmem:[%s5 + $0x1e8] sm:$0xff]
  %v257 = vld [vmem:[%s5 + $0x1f0] sm:$0xff]
  %v258 = vld [vmem:[%s5 + $0x1f8] sm:$0xff]
  %v259 = vld [vmem:[%s6] sm:$0xf]
  %v261 = vlaneseq
  %v262 = vshrl.u32 %v261, 7
  %v263 = vsub.s32 0, %v262
  %v264 = vrot.slane %v259, %v263
  %v265 = vlaneseq
  %v266 = vshrl.u32 %v265, 7
  %v267 = vsub.s32 1, %v266
  %v268 = vrot.slane %v259, %v267
  %v269 = vlaneseq
  %v270 = vshrl.u32 %v269, 7
  %v271 = vsub.s32 2, %v270
  %v272 = vrot.slane %v259, %v271
  %v273 = vlaneseq
  %v274 = vshrl.u32 %v273, 7
  %v275 = vsub.s32 3, %v274
  %v276 = vrot.slane %v259, %v275
  %281 = vmatprep.subr.mxu0 %v196
  %282 = vmatpush1.msra.mxu0 %v195
  %283 = vmatprep.subr.mxu0 %v200
  %284 = vmatpush1.msra.mxu0 %v199
  %285 = vmatprep.subr.mxu0 %v204
  %286 = vmatpush1.msra.mxu0 %v203
  %287 = vmatprep.subr.mxu0 %v208
  %288 = vmatpush1.msra.mxu0 %v207
  %289 = vmatprep.subr.mxu0 %v212
  %290 = vmatpush1.msra.mxu0 %v211
  %291 = vmatprep.subr.mxu0 %v216
  %292 = vmatpush1.msra.mxu0 %v215
  %293 = vmatprep.subr.mxu0 %v220
  %294 = vmatpush1.msra.mxu0 %v219
  %295 = vmatprep.subr.mxu0 %v224
  %296 = vmatpush1.msra.mxu0 %v223
  %297 = vmatprep.subr.mxu0 %v228
  %298 = vmatpush1.msra.mxu0 %v227
  %299 = vmatprep.subr.mxu0 %v232
  %300 = vmatpush1.msra.mxu0 %v231
  %301 = vmatprep.subr.mxu0 %v236
  %302 = vmatpush1.msra.mxu0 %v235
  %303 = vmatprep.subr.mxu0 %v240
  %304 = vmatpush1.msra.mxu0 %v239
  %305 = vmatprep.subr.mxu0 %v244
  %306 = vmatpush1.msra.mxu0 %v243
  %307 = vmatprep.subr.mxu0 %v248
  %308 = vmatpush1.msra.mxu0 %v247
  %309 = vmatprep.subr.mxu0 %v252
  %310 = vmatpush1.msra.mxu0 %v251
  %311 = vmatprep.subr.mxu0 %v256
  %312 = vmatpush1.msra.mxu0 %v255
  %313 = vmatprep.subr.mxu0 0.0
  %314 = vmatpush1.msra.mxu0 0.0
  %315 = vmatprep.subr.mxu0 0.0
  %316 = vmatpush1.msra.mxu0 0.0
  %317 = vmatprep.subr.mxu0 0.0
  %318 = vmatpush1.msra.mxu0 0.0
  %319 = vmatprep.subr.mxu0 0.0
  %320 = vmatpush1.msra.mxu0 0.0
  %321 = vmatprep.subr.mxu0 0.0
  %322 = vmatpush1.msra.mxu0 0.0
  %323 = vmatprep.subr.mxu0 0.0
  %324 = vmatpush1.msra.mxu0 0.0
  %325 = vmatprep.subr.mxu0 0.0
  %326 = vmatpush1.msra.mxu0 0.0
  %327 = vmatprep.subr.mxu0 0.0
  %328 = vmatpush1.msra.mxu0 0.0
  %329 = vmatprep.subr.mxu0 0.0
  %330 = vmatpush1.msra.mxu0 0.0
  %331 = vmatprep.subr.mxu0 0.0
  %332 = vmatpush1.msra.mxu0 0.0
  %333 = vmatprep.subr.mxu0 0.0
  %334 = vmatpush1.msra.mxu0 0.0
  %335 = vmatprep.subr.mxu0 0.0
  %336 = vmatpush1.msra.mxu0 0.0
  %337 = vmatprep.subr.mxu0 0.0
  %338 = vmatpush1.msra.mxu0 0.0
  %339 = vmatprep.subr.mxu0 0.0
  %340 = vmatpush1.msra.mxu0 0.0
  %341 = vmatprep.subr.mxu0 0.0
  %342 = vmatpush1.msra.mxu0 0.0
  %343 = vmatprep.subr.mxu0 0.0
  %344 = vmatpush1.msra.mxu0 0.0
  %345 = vmatprep.mubr.f32.mxu0 0.0
  %346 = vmatmul.mubr.f32.gmra.mrb[0].mxu0 %v192
  %v347 = vpop.f32.mrb[0].mxu0
  %v348 = vadd.f32 %v264, %v347
  %v349 = vpop.f32.mrb[0].mxu0
  %v350 = vadd.f32 %v268, %v349
  %351 = vmatprep.mubr.f32.mxu0 0.0
  %352 = vmatmul.mubr.f32.gmra.mrb[0].mxu0 %v193
  %v353 = vpop.f32.mrb[0].mxu0
  %v354 = vadd.f32 %v264, %v353
  %v355 = vpop.f32.mrb[0].mxu0
  %v356 = vadd.f32 %v268, %v355
  %357 = vmatprep.mubr.f32.mxu0 0.0
  %358 = vmatmul.mubr.f32.gmra.mrb[0].mxu0 %v194
  %v359 = vpop.f32.mrb[0].mxu0
  %v360 = vadd.f32 %v264, %v359
  %v361 = vpop.f32.mrb[0].mxu0
  %v362 = vadd.f32 %v268, %v361
  %363 = vdwg.mxu0
  %364 = vmatprep.subr.mxu0 %v198
  %365 = vmatpush1.msra.mxu0 %v197
  %366 = vmatprep.subr.mxu0 %v202
  %367 = vmatpush1.msra.mxu0 %v201
  %368 = vmatprep.subr.mxu0 %v206
  %369 = vmatpush1.msra.mxu0 %v205
  %370 = vmatprep.subr.mxu0 %v210
  %371 = vmatpush1.msra.mxu0 %v209
  %372 = vmatprep.subr.mxu0 %v214
  %373 = vmatpush1.msra.mxu0 %v213
  %374 = vmatprep.subr.mxu0 %v218
  %375 = vmatpush1.msra.mxu0 %v217
  %376 = vmatprep.subr.mxu0 %v222
  %377 = vmatpush1.msra.mxu0 %v221
  %378 = vmatprep.subr.mxu0 %v226
  %379 = vmatpush1.msra.mxu0 %v225
  %380 = vmatprep.subr.mxu0 %v230
  %381 = vmatpush1.msra.mxu0 %v229
  %382 = vmatprep.subr.mxu0 %v234
  %383 = vmatpush1.msra.mxu0 %v233
  %384 = vmatprep.subr.mxu0 %v238
  %385 = vmatpush1.msra.mxu0 %v237
  %386 = vmatprep.subr.mxu0 %v242
  %387 = vmatpush1.msra.mxu0 %v241
  %388 = vmatprep.subr.mxu0 %v246
  %389 = vmatpush1.msra.mxu0 %v245
  %390 = vmatprep.subr.mxu0 %v250
  %391 = vmatpush1.msra.mxu0 %v249
  %392 = vmatprep.subr.mxu0 %v254
  %393 = vmatpush1.msra.mxu0 %v253
  %394 = vmatprep.subr.mxu0 %v258
  %395 = vmatpush1.msra.mxu0 %v257
  %396 = vmatprep.subr.mxu0 0.0
  %397 = vmatpush1.msra.mxu0 0.0
  %398 = vmatprep.subr.mxu0 0.0
  %399 = vmatpush1.msra.mxu0 0.0
  %400 = vmatprep.subr.mxu0 0.0
  %401 = vmatpush1.msra.mxu0 0.0
  %402 = vmatprep.subr.mxu0 0.0
  %403 = vmatpush1.msra.mxu0 0.0
  %404 = vmatprep.subr.mxu0 0.0
  %405 = vmatpush1.msra.mxu0 0.0
  %406 = vmatprep.subr.mxu0 0.0
  %407 = vmatpush1.msra.mxu0 0.0
  %408 = vmatprep.subr.mxu0 0.0
  %409 = vmatpush1.msra.mxu0 0.0
  %410 = vmatprep.subr.mxu0 0.0
  %411 = vmatpush1.msra.mxu0 0.0
  %412 = vmatprep.subr.mxu0 0.0
  %413 = vmatpush1.msra.mxu0 0.0
  %414 = vmatprep.subr.mxu0 0.0
  %415 = vmatpush1.msra.mxu0 0.0
  %416 = vmatprep.subr.mxu0 0.0
  %417 = vmatpush1.msra.mxu0 0.0
  %418 = vmatprep.subr.mxu0 0.0
  %419 = vmatpush1.msra.mxu0 0.0
  %420 = vmatprep.subr.mxu0 0.0
  %421 = vmatpush1.msra.mxu0 0.0
  %422 = vmatprep.subr.mxu0 0.0
  %423 = vmatpush1.msra.mxu0 0.0
  %424 = vmatprep.subr.mxu0 0.0
  %425 = vmatpush1.msra.mxu0 0.0
  %426 = vmatprep.subr.mxu0 0.0
  %427 = vmatpush1.msra.mxu0 0.0
  %428 = vmatprep.mubr.f32.mxu0 0.0
  %429 = vmatmul.mubr.f32.gmra.mrb[0].mxu0 %v192
  %v430 = vpop.f32.mrb[0].mxu0
  %v431 = vadd.f32 %v272, %v430
  %v432 = vpop.f32.mrb[0].mxu0
  %v433 = vadd.f32 %v276, %v432
  %434 = vmatprep.mubr.f32.mxu0 0.0
  %435 = vmatmul.mubr.f32.gmra.mrb[0].mxu0 %v193
  %v436 = vpop.f32.mrb[0].mxu0
  %v437 = vadd.f32 %v272, %v436
  %v438 = vpop.f32.mrb[0].mxu0
  %v439 = vadd.f32 %v276, %v438
  %440 = vmatprep.mubr.f32.mxu0 0.0
  %441 = vmatmul.mubr.f32.gmra.mrb[0].mxu0 %v194
  %v442 = vpop.f32.mrb[0].mxu0
  %v443 = vadd.f32 %v272, %v442
  %v444 = vpop.f32.mrb[0].mxu0
  %v445 = vadd.f32 %v276, %v444
  %446 = vdwg.mxu0
  %v447 = vmul.f32 %v348, 0.70710677
  %v448 = vmul.f32 %v350, 0.70710677
  %v449 = vmul.f32 %v431, 0.70710677
  %v450 = vmul.f32 %v433, 0.70710677
  %v451 = vmul.f32 %v354, 0.70710677
  %v452 = vmul.f32 %v356, 0.70710677
  %v453 = vmul.f32 %v437, 0.70710677
  %v454 = vmul.f32 %v439, 0.70710677
  %v455 = vmul.f32 %v360, 0.70710677
  %v456 = vmul.f32 %v362, 0.70710677
  %v457 = vmul.f32 %v443, 0.70710677
  %v458 = vmul.f32 %v445, 0.70710677
  %v459 = vand.u32 2147483647, %v447
  %v460 = vand.u32 2147483647, %v448
  %v461 = vand.u32 2147483647, %v449
  %v462 = vand.u32 2147483647, %v450
  %v463 = vand.u32 2147483647, %v451
  %v464 = vand.u32 2147483647, %v452
  %v465 = vand.u32 2147483647, %v453
  %v466 = vand.u32 2147483647, %v454
  %v467 = vand.u32 2147483647, %v455
  %v468 = vand.u32 2147483647, %v456
  %v469 = vand.u32 2147483647, %v457
  %v470 = vand.u32 2147483647, %v458
  %v471 = vmul.f32 %v459, 0.3275911
  %v472 = vmul.f32 %v460, 0.3275911
  %v473 = vmul.f32 %v461, 0.3275911
  %v474 = vmul.f32 %v462, 0.3275911
  %v475 = vmul.f32 %v463, 0.3275911
  %v476 = vmul.f32 %v464, 0.3275911
  %v477 = vmul.f32 %v465, 0.3275911
  %v478 = vmul.f32 %v466, 0.3275911
  %v479 = vmul.f32 %v467, 0.3275911
  %v480 = vmul.f32 %v468, 0.3275911
  %v481 = vmul.f32 %v469, 0.3275911
  %v482 = vmul.f32 %v470, 0.3275911
  %v483 = vadd.f32 %v471, 1.0
  %v484 = vadd.f32 %v472, 1.0
  %v485 = vadd.f32 %v473, 1.0
  %v486 = vadd.f32 %v474, 1.0
  %v487 = vadd.f32 %v475, 1.0
  %v488 = vadd.f32 %v476, 1.0
  %v489 = vadd.f32 %v477, 1.0
  %v490 = vadd.f32 %v478, 1.0
  %v491 = vadd.f32 %v479, 1.0
  %v492 = vadd.f32 %v480, 1.0
  %v493 = vadd.f32 %v481, 1.0
  %v494 = vadd.f32 %v482, 1.0
  %v495 = vrcp.pop %v483
  %v496 = vmul.f32 1.0, %v495
  %v497 = vrcp.pop %v484
  %v498 = vmul.f32 1.0, %v497
  %v499 = vrcp.pop %v485
  %v500 = vmul.f32 1.0, %v499
  %v501 = vrcp.pop %v486
  %v502 = vmul.f32 1.0, %v501
  %v503 = vrcp.pop %v487
  %v504 = vmul.f32 1.0, %v503
  %v505 = vrcp.pop %v488
  %v506 = vmul.f32 1.0, %v505
  %v507 = vrcp.pop %v489
  %v508 = vmul.f32 1.0, %v507
  %v509 = vrcp.pop %v490
  %v510 = vmul.f32 1.0, %v509
  %v511 = vrcp.pop %v491
  %v512 = vmul.f32 1.0, %v511
  %v513 = vrcp.pop %v492
  %v514 = vmul.f32 1.0, %v513
  %v515 = vrcp.pop %v493
  %v516 = vmul.f32 1.0, %v515
  %v517 = vrcp.pop %v494
  %v518 = vmul.f32 1.0, %v517
  %v519 = vmul.f32 %v496, 1.0614054
  %v520 = vmul.f32 %v498, 1.0614054
  %v521 = vmul.f32 %v500, 1.0614054
  %v522 = vmul.f32 %v502, 1.0614054
  %v523 = vmul.f32 %v504, 1.0614054
  %v524 = vmul.f32 %v506, 1.0614054
  %v525 = vmul.f32 %v508, 1.0614054
  %v526 = vmul.f32 %v510, 1.0614054
  %v527 = vmul.f32 %v512, 1.0614054
  %v528 = vmul.f32 %v514, 1.0614054
  %v529 = vmul.f32 %v516, 1.0614054
  %v530 = vmul.f32 %v518, 1.0614054
  %v531 = vadd.f32 %v519, -1.4531521
  %v532 = vadd.f32 %v520, -1.4531521
  %v533 = vadd.f32 %v521, -1.4531521
  %v534 = vadd.f32 %v522, -1.4531521
  %v535 = vadd.f32 %v523, -1.4531521
  %v536 = vadd.f32 %v524, -1.4531521
  %v537 = vadd.f32 %v525, -1.4531521
  %v538 = vadd.f32 %v526, -1.4531521
  %v539 = vadd.f32 %v527, -1.4531521
  %v540 = vadd.f32 %v528, -1.4531521
  %v541 = vadd.f32 %v529, -1.4531521
  %v542 = vadd.f32 %v530, -1.4531521
  %v543 = vmul.f32 %v496, %v531
  %v544 = vmul.f32 %v498, %v532
  %v545 = vmul.f32 %v500, %v533
  %v546 = vmul.f32 %v502, %v534
  %v547 = vmul.f32 %v504, %v535
  %v548 = vmul.f32 %v506, %v536
  %v549 = vmul.f32 %v508, %v537
  %v550 = vmul.f32 %v510, %v538
  %v551 = vmul.f32 %v512, %v539
  %v552 = vmul.f32 %v514, %v540
  %v553 = vmul.f32 %v516, %v541
  %v554 = vmul.f32 %v518, %v542
  %v555 = vadd.f32 %v543, 1.4214138
  %v556 = vadd.f32 %v544, 1.4214138
  %v557 = vadd.f32 %v545, 1.4214138
  %v558 = vadd.f32 %v546, 1.4214138
  %v559 = vadd.f32 %v547, 1.4214138
  %v560 = vadd.f32 %v548, 1.4214138
  %v561 = vadd.f32 %v549, 1.4214138
  %v562 = vadd.f32 %v550, 1.4214138
  %v563 = vadd.f32 %v551, 1.4214138
  %v564 = vadd.f32 %v552, 1.4214138
  %v565 = vadd.f32 %v553, 1.4214138
  %v566 = vadd.f32 %v554, 1.4214138
  %v567 = vmul.f32 %v496, %v555
  %v568 = vmul.f32 %v498, %v556
  %v569 = vmul.f32 %v500, %v557
  %v570 = vmul.f32 %v502, %v558
  %v571 = vmul.f32 %v504, %v559
  %v572 = vmul.f32 %v506, %v560
  %v573 = vmul.f32 %v508, %v561
  %v574 = vmul.f32 %v510, %v562
  %v575 = vmul.f32 %v512, %v563
  %v576 = vmul.f32 %v514, %v564
  %v577 = vmul.f32 %v516, %v565
  %v578 = vmul.f32 %v518, %v566
  %v579 = vadd.f32 %v567, -0.28449672
  %v580 = vadd.f32 %v568, -0.28449672
  %v581 = vadd.f32 %v569, -0.28449672
  %v582 = vadd.f32 %v570, -0.28449672
  %v583 = vadd.f32 %v571, -0.28449672
  %v584 = vadd.f32 %v572, -0.28449672
  %v585 = vadd.f32 %v573, -0.28449672
  %v586 = vadd.f32 %v574, -0.28449672
  %v587 = vadd.f32 %v575, -0.28449672
  %v588 = vadd.f32 %v576, -0.28449672
  %v589 = vadd.f32 %v577, -0.28449672
  %v590 = vadd.f32 %v578, -0.28449672
  %v591 = vmul.f32 %v496, %v579
  %v592 = vmul.f32 %v498, %v580
  %v593 = vmul.f32 %v500, %v581
  %v594 = vmul.f32 %v502, %v582
  %v595 = vmul.f32 %v504, %v583
  %v596 = vmul.f32 %v506, %v584
  %v597 = vmul.f32 %v508, %v585
  %v598 = vmul.f32 %v510, %v586
  %v599 = vmul.f32 %v512, %v587
  %v600 = vmul.f32 %v514, %v588
  %v601 = vmul.f32 %v516, %v589
  %v602 = vmul.f32 %v518, %v590
  %v603 = vadd.f32 %v591, 0.2548296
  %v604 = vadd.f32 %v592, 0.2548296
  %v605 = vadd.f32 %v593, 0.2548296
  %v606 = vadd.f32 %v594, 0.2548296
  %v607 = vadd.f32 %v595, 0.2548296
  %v608 = vadd.f32 %v596, 0.2548296
  %v609 = vadd.f32 %v597, 0.2548296
  %v610 = vadd.f32 %v598, 0.2548296
  %v611 = vadd.f32 %v599, 0.2548296
  %v612 = vadd.f32 %v600, 0.2548296
  %v613 = vadd.f32 %v601, 0.2548296
  %v614 = vadd.f32 %v602, 0.2548296
  %v615 = vmul.f32 %v496, %v603
  %v616 = vmul.f32 %v498, %v604
  %v617 = vmul.f32 %v500, %v605
  %v618 = vmul.f32 %v502, %v606
  %v619 = vmul.f32 %v504, %v607
  %v620 = vmul.f32 %v506, %v608
  %v621 = vmul.f32 %v508, %v609
  %v622 = vmul.f32 %v510, %v610
  %v623 = vmul.f32 %v512, %v611
  %v624 = vmul.f32 %v514, %v612
  %v625 = vmul.f32 %v516, %v613
  %v626 = vmul.f32 %v518, %v614
  %v627 = vsub.f32 0.0, %v459
  %v628 = vsub.f32 0.0, %v460
  %v629 = vsub.f32 0.0, %v461
  %v630 = vsub.f32 0.0, %v462
  %v631 = vsub.f32 0.0, %v463
  %v632 = vsub.f32 0.0, %v464
  %v633 = vsub.f32 0.0, %v465
  %v634 = vsub.f32 0.0, %v466
  %v635 = vsub.f32 0.0, %v467
  %v636 = vsub.f32 0.0, %v468
  %v637 = vsub.f32 0.0, %v469
  %v638 = vsub.f32 0.0, %v470
  %v639 = vmul.f32 %v627, %v459
  %v640 = vmul.f32 %v628, %v460
  %v641 = vmul.f32 %v629, %v461
  %v642 = vmul.f32 %v630, %v462
  %v643 = vmul.f32 %v631, %v463
  %v644 = vmul.f32 %v632, %v464
  %v645 = vmul.f32 %v633, %v465
  %v646 = vmul.f32 %v634, %v466
  %v647 = vmul.f32 %v635, %v467
  %v648 = vmul.f32 %v636, %v468
  %v649 = vmul.f32 %v637, %v469
  %v650 = vmul.f32 %v638, %v470
  %v651 = vmul.f32 %v639, 1.442695
  %v652 = vpow.pop %v651
  %v653 = vmul.f32 %v640, 1.442695
  %v654 = vpow.pop %v653
  %v655 = vmul.f32 %v641, 1.442695
  %v656 = vpow.pop %v655
  %v657 = vmul.f32 %v642, 1.442695
  %v658 = vpow.pop %v657
  %v659 = vmul.f32 %v643, 1.442695
  %v660 = vpow.pop %v659
  %v661 = vmul.f32 %v644, 1.442695
  %v662 = vpow.pop %v661
  %v663 = vmul.f32 %v645, 1.442695
  %v664 = vpow.pop %v663
  %v665 = vmul.f32 %v646, 1.442695
  %v666 = vpow.pop %v665
  %v667 = vmul.f32 %v647, 1.442695
  %v668 = vpow.pop %v667
  %v669 = vmul.f32 %v648, 1.442695
  %v670 = vpow.pop %v669
  %v671 = vmul.f32 %v649, 1.442695
  %v672 = vpow.pop %v671
  %v673 = vmul.f32 %v650, 1.442695
  %v674 = vpow.pop %v673
  %v675 = vmul.f32 %v615, %v652
  %v676 = vmul.f32 %v616, %v654
  %v677 = vmul.f32 %v617, %v656
  %v678 = vmul.f32 %v618, %v658
  %v679 = vmul.f32 %v619, %v660
  %v680 = vmul.f32 %v620, %v662
  %v681 = vmul.f32 %v621, %v664
  %v682 = vmul.f32 %v622, %v666
  %v683 = vmul.f32 %v623, %v668
  %v684 = vmul.f32 %v624, %v670
  %v685 = vmul.f32 %v625, %v672
  %v686 = vmul.f32 %v626, %v674
  %v687 = vsub.f32 1.0, %v675
  %v688 = vsub.f32 1.0, %v676
  %v689 = vsub.f32 1.0, %v677
  %v690 = vsub.f32 1.0, %v678
  %v691 = vsub.f32 1.0, %v679
  %v692 = vsub.f32 1.0, %v680
  %v693 = vsub.f32 1.0, %v681
  %v694 = vsub.f32 1.0, %v682
  %v695 = vsub.f32 1.0, %v683
  %v696 = vsub.f32 1.0, %v684
  %v697 = vsub.f32 1.0, %v685
  %v698 = vsub.f32 1.0, %v686
  %vm699 = vcmp.lt.f32.partialorder %v447, 0.0
  %vm700 = vcmp.lt.f32.partialorder %v448, 0.0
  %vm701 = vcmp.lt.f32.partialorder %v449, 0.0
  %vm702 = vcmp.lt.f32.partialorder %v450, 0.0
  %vm703 = vcmp.lt.f32.partialorder %v451, 0.0
  %vm704 = vcmp.lt.f32.partialorder %v452, 0.0
  %vm705 = vcmp.lt.f32.partialorder %v453, 0.0
  %vm706 = vcmp.lt.f32.partialorder %v454, 0.0
  %vm707 = vcmp.lt.f32.partialorder %v455, 0.0
  %vm708 = vcmp.lt.f32.partialorder %v456, 0.0
  %vm709 = vcmp.lt.f32.partialorder %v457, 0.0
  %vm710 = vcmp.lt.f32.partialorder %v458, 0.0
  %v711 = vsub.f32 0.0, %v687
  %v712 = vsub.f32 0.0, %v688
  %v713 = vsub.f32 0.0, %v689
  %v714 = vsub.f32 0.0, %v690
  %v715 = vsub.f32 0.0, %v691
  %v716 = vsub.f32 0.0, %v692
  %v717 = vsub.f32 0.0, %v693
  %v718 = vsub.f32 0.0, %v694
  %v719 = vsub.f32 0.0, %v695
  %v720 = vsub.f32 0.0, %v696
  %v721 = vsub.f32 0.0, %v697
  %v722 = vsub.f32 0.0, %v698
  %v723 = vsel %vm699, %v711, %v687
  %v724 = vsel %vm700, %v712, %v688
  %v725 = vsel %vm701, %v713, %v689
  %v726 = vsel %vm702, %v714, %v690
  %v727 = vsel %vm703, %v715, %v691
  %v728 = vsel %vm704, %v716, %v692
  %v729 = vsel %vm705, %v717, %v693
  %v730 = vsel %vm706, %v718, %v694
  %v731 = vsel %vm707, %v719, %v695
  %v732 = vsel %vm708, %v720, %v696
  %v733 = vsel %vm709, %v721, %v697
  %v734 = vsel %vm710, %v722, %v698
  %v735 = vmul.f32 %v348, 0.5
  %v736 = vmul.f32 %v350, 0.5
  %v737 = vmul.f32 %v431, 0.5
  %v738 = vmul.f32 %v433, 0.5
  %v739 = vmul.f32 %v354, 0.5
  %v740 = vmul.f32 %v356, 0.5
  %v741 = vmul.f32 %v437, 0.5
  %v742 = vmul.f32 %v439, 0.5
  %v743 = vmul.f32 %v360, 0.5
  %v744 = vmul.f32 %v362, 0.5
  %v745 = vmul.f32 %v443, 0.5
  %v746 = vmul.f32 %v445, 0.5
  %v747 = vadd.f32 %v723, 1.0
  %v748 = vadd.f32 %v724, 1.0
  %v749 = vadd.f32 %v725, 1.0
  %v750 = vadd.f32 %v726, 1.0
  %v751 = vadd.f32 %v727, 1.0
  %v752 = vadd.f32 %v728, 1.0
  %v753 = vadd.f32 %v729, 1.0
  %v754 = vadd.f32 %v730, 1.0
  %v755 = vadd.f32 %v731, 1.0
  %v756 = vadd.f32 %v732, 1.0
  %v757 = vadd.f32 %v733, 1.0
  %v758 = vadd.f32 %v734, 1.0
  %v759 = vmul.f32 %v735, %v747
  %v760 = vmul.f32 %v736, %v748
  %v761 = vmul.f32 %v737, %v749
  %v762 = vmul.f32 %v738, %v750
  %v763 = vmul.f32 %v739, %v751
  %v764 = vmul.f32 %v740, %v752
  %v765 = vmul.f32 %v741, %v753
  %v766 = vmul.f32 %v742, %v754
  %v767 = vmul.f32 %v743, %v755
  %v768 = vmul.f32 %v744, %v756
  %v769 = vmul.f32 %v745, %v757
  %v770 = vmul.f32 %v746, %v758
  %v771 = vld [vmem:[%s7] sm:$0xff]
  %v772 = vld [vmem:[%s7 + $0x8] sm:$0xff]
  %v773 = vld [vmem:[%s7 + $0x10] sm:$0xff]
  %v774 = vld [vmem:[%s7 + $0x18] sm:$0xff]
  %v775 = vld [vmem:[%s7 + $0x20] sm:$0xff]
  %v776 = vld [vmem:[%s7 + $0x28] sm:$0xff]
  %v777 = vld [vmem:[%s7 + $0x30] sm:$0xff]
  %v778 = vld [vmem:[%s7 + $0x38] sm:$0xff]
  %v779 = vld [vmem:[%s7 + $0x40] sm:$0xff]
  %v780 = vld [vmem:[%s7 + $0x48] sm:$0xff]
  %v781 = vld [vmem:[%s7 + $0x50] sm:$0xff]
  %v782 = vld [vmem:[%s7 + $0x58] sm:$0xff]
  %v783 = vld [vmem:[%s7 + $0x60] sm:$0xff]
  %v784 = vld [vmem:[%s7 + $0x68] sm:$0xff]
  %v785 = vld [vmem:[%s7 + $0x70] sm:$0xff]
  %v786 = vld [vmem:[%s7 + $0x78] sm:$0xff]
  %v787 = vld [vmem:[%s7 + $0x80] sm:$0xff]
  %v788 = vld [vmem:[%s7 + $0x88] sm:$0xff]
  %v789 = vld [vmem:[%s7 + $0x90] sm:$0xff]
  %v790 = vld [vmem:[%s7 + $0x98] sm:$0xff]
  %v791 = vld [vmem:[%s7 + $0xa0] sm:$0xff]
  %v792 = vld [vmem:[%s7 + $0xa8] sm:$0xff]
  %v793 = vld [vmem:[%s7 + $0xb0] sm:$0xff]
  %v794 = vld [vmem:[%s7 + $0xb8] sm:$0xff]
  %v795 = vld [vmem:[%s7 + $0xc0] sm:$0xff]
  %v796 = vld [vmem:[%s7 + $0xc8] sm:$0xff]
  %v797 = vld [vmem:[%s7 + $0xd0] sm:$0xff]
  %v798 = vld [vmem:[%s7 + $0xd8] sm:$0xff]
  %v799 = vld [vmem:[%s7 + $0xe0] sm:$0xff]
  %v800 = vld [vmem:[%s7 + $0xe8] sm:$0xff]
  %v801 = vld [vmem:[%s7 + $0xf0] sm:$0xff]
  %v802 = vld [vmem:[%s7 + $0xf8] sm:$0xff]
  %v803 = vld [vmem:[%s7 + $0x100] sm:$0xff]
  %v804 = vld [vmem:[%s7 + $0x108] sm:$0xff]
  %v805 = vld [vmem:[%s7 + $0x110] sm:$0xff]
  %v806 = vld [vmem:[%s7 + $0x118] sm:$0xff]
  %v807 = vld [vmem:[%s7 + $0x120] sm:$0xff]
  %v808 = vld [vmem:[%s7 + $0x128] sm:$0xff]
  %v809 = vld [vmem:[%s7 + $0x130] sm:$0xff]
  %v810 = vld [vmem:[%s7 + $0x138] sm:$0xff]
  %v811 = vld [vmem:[%s7 + $0x140] sm:$0xff]
  %v812 = vld [vmem:[%s7 + $0x148] sm:$0xff]
  %v813 = vld [vmem:[%s7 + $0x150] sm:$0xff]
  %v814 = vld [vmem:[%s7 + $0x158] sm:$0xff]
  %v815 = vld [vmem:[%s7 + $0x160] sm:$0xff]
  %v816 = vld [vmem:[%s7 + $0x168] sm:$0xff]
  %v817 = vld [vmem:[%s7 + $0x170] sm:$0xff]
  %v818 = vld [vmem:[%s7 + $0x178] sm:$0xff]
  %v819 = vld [vmem:[%s7 + $0x180] sm:$0xff]
  %v820 = vld [vmem:[%s7 + $0x188] sm:$0xff]
  %v821 = vld [vmem:[%s7 + $0x190] sm:$0xff]
  %v822 = vld [vmem:[%s7 + $0x198] sm:$0xff]
  %v823 = vld [vmem:[%s7 + $0x1a0] sm:$0xff]
  %v824 = vld [vmem:[%s7 + $0x1a8] sm:$0xff]
  %v825 = vld [vmem:[%s7 + $0x1b0] sm:$0xff]
  %v826 = vld [vmem:[%s7 + $0x1b8] sm:$0xff]
  %v827 = vld [vmem:[%s7 + $0x1c0] sm:$0xff]
  %v828 = vld [vmem:[%s7 + $0x1c8] sm:$0xff]
  %v829 = vld [vmem:[%s7 + $0x1d0] sm:$0xff]
  %v830 = vld [vmem:[%s7 + $0x1d8] sm:$0xff]
  %v831 = vld [vmem:[%s7 + $0x1e0] sm:$0xff]
  %v832 = vld [vmem:[%s7 + $0x1e8] sm:$0xff]
  %v833 = vld [vmem:[%s7 + $0x1f0] sm:$0xff]
  %v834 = vld [vmem:[%s7 + $0x1f8] sm:$0xff]
  %v835 = vld [vmem:[%s8] sm:$0x1]
  %v837 = vlaneseq
  %v838 = vshrl.u32 %v837, 7
  %v839 = vsub.s32 0, %v838
  %v840 = vrot.slane %v835, %v839
  %842 = vmatprep.subr.mxu0 0.0
  %843 = vmatpush1.msra.mxu0 %v771
  %844 = vmatprep.subr.mxu0 0.0
  %845 = vmatpush1.msra.mxu0 %v772
  %846 = vmatprep.subr.mxu0 0.0
  %847 = vmatpush1.msra.mxu0 %v773
  %848 = vmatprep.subr.mxu0 0.0
  %849 = vmatpush1.msra.mxu0 %v774
  %850 = vmatprep.subr.mxu0 0.0
  %851 = vmatpush1.msra.mxu0 %v775
  %852 = vmatprep.subr.mxu0 0.0
  %853 = vmatpush1.msra.mxu0 %v776
  %854 = vmatprep.subr.mxu0 0.0
  %855 = vmatpush1.msra.mxu0 %v777
  %856 = vmatprep.subr.mxu0 0.0
  %857 = vmatpush1.msra.mxu0 %v778
  %858 = vmatprep.subr.mxu0 0.0
  %859 = vmatpush1.msra.mxu0 %v779
  %860 = vmatprep.subr.mxu0 0.0
  %861 = vmatpush1.msra.mxu0 %v780
  %862 = vmatprep.subr.mxu0 0.0
  %863 = vmatpush1.msra.mxu0 %v781
  %864 = vmatprep.subr.mxu0 0.0
  %865 = vmatpush1.msra.mxu0 %v782
  %866 = vmatprep.subr.mxu0 0.0
  %867 = vmatpush1.msra.mxu0 %v783
  %868 = vmatprep.subr.mxu0 0.0
  %869 = vmatpush1.msra.mxu0 %v784
  %870 = vmatprep.subr.mxu0 0.0
  %871 = vmatpush1.msra.mxu0 %v785
  %872 = vmatprep.subr.mxu0 0.0
  %873 = vmatpush1.msra.mxu0 %v786
  %874 = vmatprep.subr.mxu0 0.0
  %875 = vmatpush1.msra.mxu0 %v787
  %876 = vmatprep.subr.mxu0 0.0
  %877 = vmatpush1.msra.mxu0 %v788
  %878 = vmatprep.subr.mxu0 0.0
  %879 = vmatpush1.msra.mxu0 %v789
  %880 = vmatprep.subr.mxu0 0.0
  %881 = vmatpush1.msra.mxu0 %v790
  %882 = vmatprep.subr.mxu0 0.0
  %883 = vmatpush1.msra.mxu0 %v791
  %884 = vmatprep.subr.mxu0 0.0
  %885 = vmatpush1.msra.mxu0 %v792
  %886 = vmatprep.subr.mxu0 0.0
  %887 = vmatpush1.msra.mxu0 %v793
  %888 = vmatprep.subr.mxu0 0.0
  %889 = vmatpush1.msra.mxu0 %v794
  %890 = vmatprep.subr.mxu0 0.0
  %891 = vmatpush1.msra.mxu0 %v795
  %892 = vmatprep.subr.mxu0 0.0
  %893 = vmatpush1.msra.mxu0 %v796
  %894 = vmatprep.subr.mxu0 0.0
  %895 = vmatpush1.msra.mxu0 %v797
  %896 = vmatprep.subr.mxu0 0.0
  %897 = vmatpush1.msra.mxu0 %v798
  %898 = vmatprep.subr.mxu0 0.0
  %899 = vmatpush1.msra.mxu0 %v799
  %900 = vmatprep.subr.mxu0 0.0
  %901 = vmatpush1.msra.mxu0 %v800
  %902 = vmatprep.subr.mxu0 0.0
  %903 = vmatpush1.msra.mxu0 %v801
  %904 = vmatprep.subr.mxu0 0.0
  %905 = vmatpush1.msra.mxu0 %v802
  %906 = vmatprep.mubr.f32.mxu0 %v760
  %907 = vmatmul.mubr.f32.gmra.mrb[0].mxu0 %v759
  %v908 = vpop.f32.mrb[0].mxu0
  %v909 = vadd.f32 %v840, %v908
  %v910 = vpop.f32.mrb[0].mxu0
  %911 = vmatprep.mubr.f32.mxu0 %v764
  %912 = vmatmul.mubr.f32.gmra.mrb[0].mxu0 %v763
  %v913 = vpop.f32.mrb[0].mxu0
  %v914 = vadd.f32 %v840, %v913
  %v915 = vpop.f32.mrb[0].mxu0
  %916 = vmatprep.mubr.f32.mxu0 %v768
  %917 = vmatmul.mubr.f32.gmra.mrb[0].mxu0 %v767
  %v918 = vpop.f32.mrb[0].mxu0
  %v919 = vadd.f32 %v840, %v918
  %v920 = vpop.f32.mrb[0].mxu0
  %921 = vdwg.mxu0
  %922 = vmatprep.subr.mxu0 0.0
  %923 = vmatpush1.msra.mxu0 %v803
  %924 = vmatprep.subr.mxu0 0.0
  %925 = vmatpush1.msra.mxu0 %v804
  %926 = vmatprep.subr.mxu0 0.0
  %927 = vmatpush1.msra.mxu0 %v805
  %928 = vmatprep.subr.mxu0 0.0
  %929 = vmatpush1.msra.mxu0 %v806
  %930 = vmatprep.subr.mxu0 0.0
  %931 = vmatpush1.msra.mxu0 %v807
  %932 = vmatprep.subr.mxu0 0.0
  %933 = vmatpush1.msra.mxu0 %v808
  %934 = vmatprep.subr.mxu0 0.0
  %935 = vmatpush1.msra.mxu0 %v809
  %936 = vmatprep.subr.mxu0 0.0
  %937 = vmatpush1.msra.mxu0 %v810
  %938 = vmatprep.subr.mxu0 0.0
  %939 = vmatpush1.msra.mxu0 %v811
  %940 = vmatprep.subr.mxu0 0.0
  %941 = vmatpush1.msra.mxu0 %v812
  %942 = vmatprep.subr.mxu0 0.0
  %943 = vmatpush1.msra.mxu0 %v813
  %944 = vmatprep.subr.mxu0 0.0
  %945 = vmatpush1.msra.mxu0 %v814
  %946 = vmatprep.subr.mxu0 0.0
  %947 = vmatpush1.msra.mxu0 %v815
  %948 = vmatprep.subr.mxu0 0.0
  %949 = vmatpush1.msra.mxu0 %v816
  %950 = vmatprep.subr.mxu0 0.0
  %951 = vmatpush1.msra.mxu0 %v817
  %952 = vmatprep.subr.mxu0 0.0
  %953 = vmatpush1.msra.mxu0 %v818
  %954 = vmatprep.subr.mxu0 0.0
  %955 = vmatpush1.msra.mxu0 %v819
  %956 = vmatprep.subr.mxu0 0.0
  %957 = vmatpush1.msra.mxu0 %v820
  %958 = vmatprep.subr.mxu0 0.0
  %959 = vmatpush1.msra.mxu0 %v821
  %960 = vmatprep.subr.mxu0 0.0
  %961 = vmatpush1.msra.mxu0 %v822
  %962 = vmatprep.subr.mxu0 0.0
  %963 = vmatpush1.msra.mxu0 %v823
  %964 = vmatprep.subr.mxu0 0.0
  %965 = vmatpush1.msra.mxu0 %v824
  %966 = vmatprep.subr.mxu0 0.0
  %967 = vmatpush1.msra.mxu0 %v825
  %968 = vmatprep.subr.mxu0 0.0
  %969 = vmatpush1.msra.mxu0 %v826
  %970 = vmatprep.subr.mxu0 0.0
  %971 = vmatpush1.msra.mxu0 %v827
  %972 = vmatprep.subr.mxu0 0.0
  %973 = vmatpush1.msra.mxu0 %v828
  %974 = vmatprep.subr.mxu0 0.0
  %975 = vmatpush1.msra.mxu0 %v829
  %976 = vmatprep.subr.mxu0 0.0
  %977 = vmatpush1.msra.mxu0 %v830
  %978 = vmatprep.subr.mxu0 0.0
  %979 = vmatpush1.msra.mxu0 %v831
  %980 = vmatprep.subr.mxu0 0.0
  %981 = vmatpush1.msra.mxu0 %v832
  %982 = vmatprep.subr.mxu0 0.0
  %983 = vmatpush1.msra.mxu0 %v833
  %984 = vmatprep.subr.mxu0 0.0
  %985 = vmatpush1.msra.mxu0 %v834
  %986 = vmatprep.mubr.f32.mxu0 %v762
  %987 = vmatmul.mubr.f32.gmra.mrb[0].mxu0 %v761
  %v988 = vpop.f32.mrb[0].mxu0
  %v989 = vadd.f32 %v909, %v988
  %v990 = vpop.f32.mrb[0].mxu0
  %991 = vmatprep.mubr.f32.mxu0 %v766
  %992 = vmatmul.mubr.f32.gmra.mrb[0].mxu0 %v765
  %v993 = vpop.f32.mrb[0].mxu0
  %v994 = vadd.f32 %v914, %v993
  %v995 = vpop.f32.mrb[0].mxu0
  %996 = vmatprep.mubr.f32.mxu0 %v770
  %997 = vmatmul.mubr.f32.gmra.mrb[0].mxu0 %v769
  %v998 = vpop.f32.mrb[0].mxu0
  %v999 = vadd.f32 %v919, %v998
  %v1000 = vpop.f32.mrb[0].mxu0
  %1001 = vdwg.mxu0
  %v1002 = vadd.f32 %v125, %v989
  %v1003 = vadd.f32 %v130, %v994
  %v1004 = vadd.f32 %v135, %v999
  %1005 = vst [vmem:[%s9] sm:$0xff] %v1002
  %1006 = vst [vmem:[%s9 + $0x8] sm:$0xff] %v1003
  %1007 = vst [vmem:[%s9 + $0x10] sm:$0xf] %v1004
  // Predicated region
  $region38: #{query_sa_block_pallas.3} parent=0 // pred_check
    _
  $region39: #{query_sa_block_pallas.3} parent=0 // pred_check_branch
    %1009 = sbr.rel (0) target = $region41
  $region40: #{query_sa_block_pallas.3} parent=0 // pred_region
    _
  $region41: #{query_sa_block_pallas.3} parent=0 // pred_fallthru
    _
  // Predicated region
  $region42: #{query_sa_block_pallas.3} parent=0 // pred_check
    _
  $region43: #{query_sa_block_pallas.3} parent=0 // pred_check_branch
    %1011 = sbr.rel (0) target = $region45
  $region44: #{query_sa_block_pallas.3} parent=0 // pred_region
    _
  $region45: #{query_sa_block_pallas.3} parent=0 // pred_fallthru
    _

</llo_original>
